<compile_context>
chip_gen: v7x
topology: tpu7x:2x2x1
jax: 0.10.0
libtpu: 0.0.40
codegen_flags: <defaults>
</compile_context>

<pallas_src>
import functools
import numpy as np
import jax
import jax.numpy as jnp
from jax import lax
from jax.experimental import pallas as pl
from jax.experimental.pallas import tpu as pltpu


# ----------------------------- Pallas kernel --------------------------------
def _tree_lstm_kernel(num_levels, h_pad,
                      a_ref, node_lvl_ref, has_child_ref, iou_leaf_ref,
                      u_iou_ref, u_f_ref, b_f_ref, b_iou_ref,
                      h0_ref, c0_ref,
                      h_out_ref):
    """All topological levels in one invocation; one fori iteration == frontier."""
    A = a_ref[...]                               # (N, N)  bf16, A[parent, child]=1
    u_iou = u_iou_ref[...]                       # (H, 3H) bf16
    u_f = u_f_ref[...]                           # (H, H)  bf16
    b_f = b_f_ref[...]                           # (1, H)  f32
    b_iou = b_iou_ref[...]                       # (1, 3H) f32
    iou_leaf = iou_leaf_ref[...]                 # (N, 3H) f32  (= X @ W_iou, hoisted)
    node_lvl = node_lvl_ref[...]                 # (N, 1)  int32 (-1 for padded rows)
    hc_mask = has_child_ref[...] > 0.5           # (N, 1)  bool  (hoisted, invariant)

    def level_body(l, carry):
        h, c = carry                             # (N, H) f32
        h_b = h.astype(jnp.bfloat16)

        # reduce_func: sum of children h, forget-gated sum of children c
        h_tild = jnp.dot(A, h_b, preferred_element_type=jnp.float32)
        f_gate = jax.nn.sigmoid(
            jnp.dot(h_b, u_f, preferred_element_type=jnp.float32) + b_f)
        c_red = jnp.dot(A, (f_gate * c).astype(jnp.bfloat16),
                        preferred_element_type=jnp.float32)

        # leaves keep iou = W_iou(x); internal nodes get iou = U_iou(h_tild)
        iou_int = jnp.dot(h_tild.astype(jnp.bfloat16), u_iou,
                          preferred_element_type=jnp.float32)
        iou = jnp.where(hc_mask, iou_int, iou_leaf) + b_iou

        # apply_node_func
        i_g = jax.nn.sigmoid(iou[:, 0:h_pad])
        o_g = jax.nn.sigmoid(iou[:, h_pad:2 * h_pad])
        u_g = jnp.tanh(iou[:, 2 * h_pad:3 * h_pad])
        c_pre = jnp.where(hc_mask, c_red, c)     # leaves: carried initial c
        c_new = i_g * u_g + c_pre
        h_new = o_g * jnp.tanh(c_new)

        # commit only the nodes belonging to this frontier
        m = node_lvl == l
        return jnp.where(m, h_new, h), jnp.where(m, c_new, c)

    h_fin, _ = lax.fori_loop(0, num_levels, level_body,
                             (h0_ref[...], c0_ref[...]), unroll=True)
    h_out_ref[...] = h_fin


# ------------------------------ wrapper --------------------------------------
def tree_lstm_propagate(A, node_level, X, w_iou_t, u_iou_t, u_f_t, b_f, b_iou,
                        h0, c0, *, num_levels, h_pad=128):
    """Topological propagation; returns final h (N, H) for every node."""
    N = A.shape[0]
    H = h0.shape[1]
    n_pad = ((N + 7) // 8) * 8                   # sublane-align node axis

    def pad2(x, rows, cols):
        return jnp.pad(x, ((0, rows - x.shape[0]), (0, cols - x.shape[1])))

    def pad_iou_cols(x):
        # (rows, 3H) -> zero-pad each of the i/o/u chunks to h_pad -> (rows, 3*h_pad)
        rows = x.shape[0]
        x3 = x.reshape(rows, 3, H)
        x3 = jnp.pad(x3, ((0, 0), (0, 0), (0, h_pad - H)))
        return x3.reshape(rows, 3 * h_pad)

    # loop-invariant pieces hoisted out of the kernel (computed once in XLA)
    iou_leaf = X @ w_iou_t                                            # (N, 3H)
    has_children = (A.sum(axis=1, keepdims=True) > 0.0).astype(jnp.float32)

    A_p = pad2(A, n_pad, n_pad).astype(jnp.bfloat16)
    iou_leaf_p = jnp.pad(pad_iou_cols(iou_leaf), ((0, n_pad - N), (0, 0)))
    u_iou_p = jnp.pad(pad_iou_cols(u_iou_t),
                      ((0, h_pad - H), (0, 0))).astype(jnp.bfloat16)
    u_f_p = pad2(u_f_t, h_pad, h_pad).astype(jnp.bfloat16)
    b_f_p = jnp.pad(b_f, ((0, 0), (0, h_pad - H)))
    b_iou_p = pad_iou_cols(b_iou)
    h0_p = pad2(h0, n_pad, h_pad)
    c0_p = pad2(c0, n_pad, h_pad)
    hc_p = jnp.pad(has_children, ((0, n_pad - N), (0, 0)))
    lvl_p = jnp.pad(node_level.reshape(N, 1).astype(jnp.int32),
                    ((0, n_pad - N), (0, 0)), constant_values=-1)

    kernel = functools.partial(_tree_lstm_kernel, num_levels, h_pad)
    vspec = pl.BlockSpec(memory_space=pltpu.MemorySpace.VMEM)
    h_full = pl.pallas_call(
        kernel,
        out_shape=jax.ShapeDtypeStruct((n_pad, h_pad), jnp.float32),
        in_specs=[vspec] * 10,
        out_specs=vspec,
        compiler_params=pltpu.CompilerParams(vmem_limit_bytes=48 * 1024 * 1024),
    )(A_p, lvl_p, hc_p, iou_leaf_p, u_iou_p, u_f_p, b_f_p, b_iou_p, h0_p, c0_p)
    return h_full[:N, :H]


# ------------------------- pure-JAX reference --------------------------------
def tree_lstm_propagate_ref(A, node_level, X, w_iou_t, u_iou_t, u_f_t, b_f,
                            b_iou, h0, c0, num_levels):
    h, c = h0, c0
    H = h0.shape[1]
    iou_leaf = X @ w_iou_t
    hc = A.sum(axis=1, keepdims=True) > 0.0
    for l in range(num_levels):
        h_tild = A @ h
        f = jax.nn.sigmoid(h @ u_f_t + b_f)
        c_red = A @ (f * c)
        iou = jnp.where(hc, h_tild @ u_iou_t, iou_leaf) + b_iou
        i_g = jax.nn.sigmoid(iou[:, :H])
        o_g = jax.nn.sigmoid(iou[:, H:2 * H])
        u_g = jnp.tanh(iou[:, 2 * H:])
        c_pre = jnp.where(hc, c_red, c)
        c_new = i_g * u_g + c_pre
        h_new = o_g * jnp.tanh(c_new)
        m = (node_level == l).reshape(-1, 1)
        h = jnp.where(m, h_new, h)
        c = jnp.where(m, c_new, c)
    return h


# ------------------------------ forward glue ----------------------------------
def tree_lstm_forward(h_all, head_ids, n_nodes):
    """Mirrors TreeLSTM.forward epilogue: root gather + per-tree inner-node means."""
    head_h = h_all[jnp.array(head_ids, dtype=jnp.int32)]
    lims = list(head_ids) + [n_nodes]
    inner_h = jnp.concatenate(
        [jnp.mean(h_all[s + 1:e - 1, :], axis=0, keepdims=True)
         for s, e in zip(lims[:-1], lims[1:])],
        axis=0)
    return jnp.concatenate([head_h, inner_h], axis=1)


# --------------------------------- main ---------------------------------------
if __name__ == "__main__":
    # 2 complete binary trees, 15 nodes each (root = first node of each block,
    # matching the h[s+1:e-1] inner-node convention of the module).
    NUM_TREES = 2
    NODES_PER_TREE = 15
    N = NUM_TREES * NODES_PER_TREE
    X_SIZE = 24
    H_SIZE = 32

    A_np = np.zeros((N, N), np.float32)          # A[parent, child] = 1
    depth = np.zeros(N, np.int32)
    for t in range(NUM_TREES):
        base = t * NODES_PER_TREE
        for i in range(NODES_PER_TREE):
            depth[base + i] = int(np.floor(np.log2(i + 1)))
            for ch in (2 * i + 1, 2 * i + 2):
                if ch < NODES_PER_TREE:
                    A_np[base + i, base + ch] = 1.0
    max_depth = int(depth.max())
    NUM_LEVELS = max_depth + 1
    node_level_np = (max_depth - depth).astype(np.int32)   # leaves first, roots last
    head_ids = [t * NODES_PER_TREE for t in range(NUM_TREES)]

    # Deterministic parameters / inputs.
    key = jax.random.PRNGKey(0)
    k_wiou, k_uiou, k_uf, k_bf, k_x, k_c = jax.random.split(key, 6)
    w_iou_t = 0.1 * jax.random.normal(k_wiou, (X_SIZE, 3 * H_SIZE), jnp.float32)
    u_iou_t = 0.1 * jax.random.normal(k_uiou, (H_SIZE, 3 * H_SIZE), jnp.float32)
    u_f_t = 0.1 * jax.random.normal(k_uf, (H_SIZE, H_SIZE), jnp.float32)
    b_f = 0.1 * jax.random.normal(k_bf, (1, H_SIZE), jnp.float32)
    b_iou = jnp.zeros((1, 3 * H_SIZE), jnp.float32)        # matches module init

    X = jax.random.normal(k_x, (N, X_SIZE), jnp.float32)
    h0 = jnp.zeros((N, H_SIZE), jnp.float32)
    c0 = 0.1 * jax.random.normal(k_c, (N, H_SIZE), jnp.float32)

    A = jnp.asarray(A_np)
    node_level = jnp.asarray(node_level_np)

    h_all = tree_lstm_propagate(A, node_level, X, w_iou_t, u_iou_t, u_f_t,
                                b_f, b_iou, h0, c0, num_levels=NUM_LEVELS)
    h_all = jax.block_until_ready(h_all)

    # Cross-check propagation against a pure-JAX f32 reference (kernel uses bf16
    # MXU inputs, hence the loosened tolerance).
    h_ref = tree_lstm_propagate_ref(A, node_level, X, w_iou_t, u_iou_t, u_f_t,
                                    b_f, b_iou, h0, c0, NUM_LEVELS)
    np.testing.assert_allclose(np.asarray(h_all), np.asarray(h_ref),
                               rtol=2e-2, atol=2e-2)

    out = tree_lstm_forward(h_all, head_ids, N)            # (num_trees, 2*H_SIZE)
    out = jax.block_until_ready(out)
    assert out.shape == (NUM_TREES, 2 * H_SIZE)
    print("KERNEL_OK")
</pallas_src>

<mosaic_0001>
module attributes {stable_mosaic.version = 11 : i64} {
  func.func @_tree_lstm_kernel(%arg0: memref<32x32xbf16, #tpu.memory_space<vmem>>, %arg1: memref<32x1xi32, #tpu.memory_space<vmem>>, %arg2: memref<32x1xf32, #tpu.memory_space<vmem>>, %arg3: memref<32x384xf32, #tpu.memory_space<vmem>>, %arg4: memref<128x384xbf16, #tpu.memory_space<vmem>>, %arg5: memref<128x128xbf16, #tpu.memory_space<vmem>>, %arg6: memref<1x128xf32, #tpu.memory_space<vmem>>, %arg7: memref<1x384xf32, #tpu.memory_space<vmem>>, %arg8: memref<32x128xf32, #tpu.memory_space<vmem>>, %arg9: memref<32x128xf32, #tpu.memory_space<vmem>>, %arg10: memref<32x128xf32, #tpu.memory_space<vmem>>) attributes {dimension_semantics = [], scalar_prefetch = 0 : i64, scratch_operands = 0 : i64, tpu.core_type = #tpu.core_type<tc>} {
    %c0 = arith.constant 0 : index
    %c0_0 = arith.constant 0 : index
    %0 = vector.load %arg0[%c0, %c0_0] : memref<32x32xbf16, #tpu.memory_space<vmem>>, vector<32x32xbf16>
    %c0_1 = arith.constant 0 : index
    %c0_2 = arith.constant 0 : index
    %1 = vector.load %arg4[%c0_1, %c0_2] : memref<128x384xbf16, #tpu.memory_space<vmem>>, vector<128x384xbf16>
    %c0_3 = arith.constant 0 : index
    %c0_4 = arith.constant 0 : index
    %2 = vector.load %arg5[%c0_3, %c0_4] : memref<128x128xbf16, #tpu.memory_space<vmem>>, vector<128x128xbf16>
    %c0_5 = arith.constant 0 : index
    %c0_6 = arith.constant 0 : index
    %3 = vector.load %arg6[%c0_5, %c0_6] : memref<1x128xf32, #tpu.memory_space<vmem>>, vector<1x128xf32>
    %c0_7 = arith.constant 0 : index
    %c0_8 = arith.constant 0 : index
    %4 = vector.load %arg7[%c0_7, %c0_8] : memref<1x384xf32, #tpu.memory_space<vmem>>, vector<1x384xf32>
    %c0_9 = arith.constant 0 : index
    %c0_10 = arith.constant 0 : index
    %5 = vector.load %arg3[%c0_9, %c0_10] : memref<32x384xf32, #tpu.memory_space<vmem>>, vector<32x384xf32>
    %c0_11 = arith.constant 0 : index
    %c0_12 = arith.constant 0 : index
    %6 = vector.load %arg1[%c0_11, %c0_12] : memref<32x1xi32, #tpu.memory_space<vmem>>, vector<32x1xi32>
    %c0_13 = arith.constant 0 : index
    %c0_14 = arith.constant 0 : index
    %7 = vector.load %arg2[%c0_13, %c0_14] : memref<32x1xf32, #tpu.memory_space<vmem>>, vector<32x1xf32>
    %cst = arith.constant 5.000000e-01 : f32
    %8 = vector.broadcast %cst : f32 to vector<32x1xf32>
    %9 = arith.cmpf ogt, %7, %8 : vector<32x1xf32>
    %c0_15 = arith.constant 0 : index
    %c0_16 = arith.constant 0 : index
    %10 = vector.load %arg8[%c0_15, %c0_16] : memref<32x128xf32, #tpu.memory_space<vmem>>, vector<32x128xf32>
    %c0_17 = arith.constant 0 : index
    %c0_18 = arith.constant 0 : index
    %11 = vector.load %arg9[%c0_17, %c0_18] : memref<32x128xf32, #tpu.memory_space<vmem>>, vector<32x128xf32>
    %c0_i32 = arith.constant 0 : i32
    %12 = arith.truncf %10 : vector<32x128xf32> to vector<32x128xbf16>
    %cst_19 = arith.constant dense<0.000000e+00> : vector<32x128xf32>
    %13 = tpu.matmul %0, %12, %cst_19 {dimension_numbers = #tpu.dot_dimension_numbers<[1], [0], [0], [1], [0, 0, 1, 1], [], []>} : vector<32x32xbf16>, vector<32x128xbf16>, vector<32x128xf32> -> vector<32x128xf32>
    %cst_20 = arith.constant dense<0.000000e+00> : vector<32x128xf32>
    %14 = tpu.matmul %12, %2, %cst_20 {dimension_numbers = #tpu.dot_dimension_numbers<[1], [0], [0], [1], [0, 0, 1, 1], [], []>} : vector<32x128xbf16>, vector<128x128xbf16>, vector<32x128xf32> -> vector<32x128xf32>
    %15 = vector.broadcast %3 : vector<1x128xf32> to vector<32x128xf32>
    %16 = arith.addf %14, %15 : vector<32x128xf32>
    %17 = arith.negf %16 : vector<32x128xf32>
    %18 = math.exp %17 : vector<32x128xf32>
    %cst_21 = arith.constant 1.000000e+00 : f32
    %19 = vector.broadcast %cst_21 : f32 to vector<32x128xf32>
    %20 = arith.addf %19, %18 : vector<32x128xf32>
    %21 = arith.divf %19, %20 : vector<32x128xf32>
    %22 = arith.mulf %21, %11 : vector<32x128xf32>
    %23 = arith.truncf %22 : vector<32x128xf32> to vector<32x128xbf16>
    %cst_22 = arith.constant dense<0.000000e+00> : vector<32x128xf32>
    %24 = tpu.matmul %0, %23, %cst_22 {dimension_numbers = #tpu.dot_dimension_numbers<[1], [0], [0], [1], [0, 0, 1, 1], [], []>} : vector<32x32xbf16>, vector<32x128xbf16>, vector<32x128xf32> -> vector<32x128xf32>
    %25 = arith.truncf %13 : vector<32x128xf32> to vector<32x128xbf16>
    %cst_23 = arith.constant dense<0.000000e+00> : vector<32x384xf32>
    %26 = tpu.matmul %25, %1, %cst_23 {dimension_numbers = #tpu.dot_dimension_numbers<[1], [0], [0], [1], [0, 0, 1, 1], [], []>} : vector<32x128xbf16>, vector<128x384xbf16>, vector<32x384xf32> -> vector<32x384xf32>
    %27 = vector.shape_cast %9 : vector<32x1xi1> to vector<32x1xi1>
    %28 = vector.broadcast %27 : vector<32x1xi1> to vector<32x384xi1>
    %29 = arith.select %28, %26, %5 : vector<32x384xi1>, vector<32x384xf32>
    %30 = vector.broadcast %4 : vector<1x384xf32> to vector<32x384xf32>
    %31 = arith.addf %29, %30 : vector<32x384xf32>
    %32 = vector.extract_strided_slice %31 {offsets = [0, 0], sizes = [32, 128], strides = [1, 1]} : vector<32x384xf32> to vector<32x128xf32>
    %33 = arith.negf %32 : vector<32x128xf32>
    %34 = math.exp %33 : vector<32x128xf32>
    %cst_24 = arith.constant 1.000000e+00 : f32
    %35 = vector.broadcast %cst_24 : f32 to vector<32x128xf32>
    %36 = arith.addf %35, %34 : vector<32x128xf32>
    %37 = arith.divf %35, %36 : vector<32x128xf32>
    %38 = vector.extract_strided_slice %31 {offsets = [0, 128], sizes = [32, 128], strides = [1, 1]} : vector<32x384xf32> to vector<32x128xf32>
    %39 = arith.negf %38 : vector<32x128xf32>
    %40 = math.exp %39 : vector<32x128xf32>
    %cst_25 = arith.constant 1.000000e+00 : f32
    %41 = vector.broadcast %cst_25 : f32 to vector<32x128xf32>
    %42 = arith.addf %41, %40 : vector<32x128xf32>
    %43 = arith.divf %41, %42 : vector<32x128xf32>
    %44 = vector.extract_strided_slice %31 {offsets = [0, 256], sizes = [32, 128], strides = [1, 1]} : vector<32x384xf32> to vector<32x128xf32>
    %45 = math.tanh %44 : vector<32x128xf32>
    %46 = vector.shape_cast %9 : vector<32x1xi1> to vector<32x1xi1>
    %47 = vector.broadcast %46 : vector<32x1xi1> to vector<32x128xi1>
    %48 = arith.select %47, %24, %11 : vector<32x128xi1>, vector<32x128xf32>
    %49 = arith.mulf %37, %45 : vector<32x128xf32>
    %50 = arith.addf %49, %48 : vector<32x128xf32>
    %51 = math.tanh %50 : vector<32x128xf32>
    %52 = arith.mulf %43, %51 : vector<32x128xf32>
    %53 = vector.broadcast %c0_i32 : i32 to vector<32x1xi32>
    %54 = arith.cmpi eq, %6, %53 : vector<32x1xi32>
    %55 = vector.shape_cast %54 : vector<32x1xi1> to vector<32x1xi1>
    %56 = vector.broadcast %55 : vector<32x1xi1> to vector<32x128xi1>
    %57 = arith.select %56, %52, %10 : vector<32x128xi1>, vector<32x128xf32>
    %58 = vector.shape_cast %54 : vector<32x1xi1> to vector<32x1xi1>
    %59 = vector.broadcast %58 : vector<32x1xi1> to vector<32x128xi1>
    %60 = arith.select %59, %50, %11 : vector<32x128xi1>, vector<32x128xf32>
    %c1_i32 = arith.constant 1 : i32
    %61 = arith.truncf %57 : vector<32x128xf32> to vector<32x128xbf16>
    %cst_26 = arith.constant dense<0.000000e+00> : vector<32x128xf32>
    %62 = tpu.matmul %0, %61, %cst_26 {dimension_numbers = #tpu.dot_dimension_numbers<[1], [0], [0], [1], [0, 0, 1, 1], [], []>} : vector<32x32xbf16>, vector<32x128xbf16>, vector<32x128xf32> -> vector<32x128xf32>
    %cst_27 = arith.constant dense<0.000000e+00> : vector<32x128xf32>
    %63 = tpu.matmul %61, %2, %cst_27 {dimension_numbers = #tpu.dot_dimension_numbers<[1], [0], [0], [1], [0, 0, 1, 1], [], []>} : vector<32x128xbf16>, vector<128x128xbf16>, vector<32x128xf32> -> vector<32x128xf32>
    %64 = vector.broadcast %3 : vector<1x128xf32> to vector<32x128xf32>
    %65 = arith.addf %63, %64 : vector<32x128xf32>
    %66 = arith.negf %65 : vector<32x128xf32>
    %67 = math.exp %66 : vector<32x128xf32>
    %cst_28 = arith.constant 1.000000e+00 : f32
    %68 = vector.broadcast %cst_28 : f32 to vector<32x128xf32>
    %69 = arith.addf %68, %67 : vector<32x128xf32>
    %70 = arith.divf %68, %69 : vector<32x128xf32>
    %71 = arith.mulf %70, %60 : vector<32x128xf32>
    %72 = arith.truncf %71 : vector<32x128xf32> to vector<32x128xbf16>
    %cst_29 = arith.constant dense<0.000000e+00> : vector<32x128xf32>
    %73 = tpu.matmul %0, %72, %cst_29 {dimension_numbers = #tpu.dot_dimension_numbers<[1], [0], [0], [1], [0, 0, 1, 1], [], []>} : vector<32x32xbf16>, vector<32x128xbf16>, vector<32x128xf32> -> vector<32x128xf32>
    %74 = arith.truncf %62 : vector<32x128xf32> to vector<32x128xbf16>
    %cst_30 = arith.constant dense<0.000000e+00> : vector<32x384xf32>
    %75 = tpu.matmul %74, %1, %cst_30 {dimension_numbers = #tpu.dot_dimension_numbers<[1], [0], [0], [1], [0, 0, 1, 1], [], []>} : vector<32x128xbf16>, vector<128x384xbf16>, vector<32x384xf32> -> vector<32x384xf32>
    %76 = vector.shape_cast %9 : vector<32x1xi1> to vector<32x1xi1>
    %77 = vector.broadcast %76 : vector<32x1xi1> to vector<32x384xi1>
    %78 = arith.select %77, %75, %5 : vector<32x384xi1>, vector<32x384xf32>
    %79 = vector.broadcast %4 : vector<1x384xf32> to vector<32x384xf32>
    %80 = arith.addf %78, %79 : vector<32x384xf32>
    %81 = vector.extract_strided_slice %80 {offsets = [0, 0], sizes = [32, 128], strides = [1, 1]} : vector<32x384xf32> to vector<32x128xf32>
    %82 = arith.negf %81 : vector<32x128xf32>
    %83 = math.exp %82 : vector<32x128xf32>
    %cst_31 = arith.constant 1.000000e+00 : f32
    %84 = vector.broadcast %cst_31 : f32 to vector<32x128xf32>
    %85 = arith.addf %84, %83 : vector<32x128xf32>
    %86 = arith.divf %84, %85 : vector<32x128xf32>
    %87 = vector.extract_strided_slice %80 {offsets = [0, 128], sizes = [32, 128], strides = [1, 1]} : vector<32x384xf32> to vector<32x128xf32>
    %88 = arith.negf %87 : vector<32x128xf32>
    %89 = math.exp %88 : vector<32x128xf32>
    %cst_32 = arith.constant 1.000000e+00 : f32
    %90 = vector.broadcast %cst_32 : f32 to vector<32x128xf32>
    %91 = arith.addf %90, %89 : vector<32x128xf32>
    %92 = arith.divf %90, %91 : vector<32x128xf32>
    %93 = vector.extract_strided_slice %80 {offsets = [0, 256], sizes = [32, 128], strides = [1, 1]} : vector<32x384xf32> to vector<32x128xf32>
    %94 = math.tanh %93 : vector<32x128xf32>
    %95 = vector.shape_cast %9 : vector<32x1xi1> to vector<32x1xi1>
    %96 = vector.broadcast %95 : vector<32x1xi1> to vector<32x128xi1>
    %97 = arith.select %96, %73, %60 : vector<32x128xi1>, vector<32x128xf32>
    %98 = arith.mulf %86, %94 : vector<32x128xf32>
    %99 = arith.addf %98, %97 : vector<32x128xf32>
    %100 = math.tanh %99 : vector<32x128xf32>
    %101 = arith.mulf %92, %100 : vector<32x128xf32>
    %102 = vector.broadcast %c1_i32 : i32 to vector<32x1xi32>
    %103 = arith.cmpi eq, %6, %102 : vector<32x1xi32>
    %104 = vector.shape_cast %103 : vector<32x1xi1> to vector<32x1xi1>
    %105 = vector.broadcast %104 : vector<32x1xi1> to vector<32x128xi1>
    %106 = arith.select %105, %101, %57 : vector<32x128xi1>, vector<32x128xf32>
    %107 = vector.shape_cast %103 : vector<32x1xi1> to vector<32x1xi1>
    %108 = vector.broadcast %107 : vector<32x1xi1> to vector<32x128xi1>
    %109 = arith.select %108, %99, %60 : vector<32x128xi1>, vector<32x128xf32>
    %c2_i32 = arith.constant 2 : i32
    %110 = arith.truncf %106 : vector<32x128xf32> to vector<32x128xbf16>
    %cst_33 = arith.constant dense<0.000000e+00> : vector<32x128xf32>
    %111 = tpu.matmul %0, %110, %cst_33 {dimension_numbers = #tpu.dot_dimension_numbers<[1], [0], [0], [1], [0, 0, 1, 1], [], []>} : vector<32x32xbf16>, vector<32x128xbf16>, vector<32x128xf32> -> vector<32x128xf32>
    %cst_34 = arith.constant dense<0.000000e+00> : vector<32x128xf32>
    %112 = tpu.matmul %110, %2, %cst_34 {dimension_numbers = #tpu.dot_dimension_numbers<[1], [0], [0], [1], [0, 0, 1, 1], [], []>} : vector<32x128xbf16>, vector<128x128xbf16>, vector<32x128xf32> -> vector<32x128xf32>
    %113 = vector.broadcast %3 : vector<1x128xf32> to vector<32x128xf32>
    %114 = arith.addf %112, %113 : vector<32x128xf32>
    %115 = arith.negf %114 : vector<32x128xf32>
    %116 = math.exp %115 : vector<32x128xf32>
    %cst_35 = arith.constant 1.000000e+00 : f32
    %117 = vector.broadcast %cst_35 : f32 to vector<32x128xf32>
    %118 = arith.addf %117, %116 : vector<32x128xf32>
    %119 = arith.divf %117, %118 : vector<32x128xf32>
    %120 = arith.mulf %119, %109 : vector<32x128xf32>
    %121 = arith.truncf %120 : vector<32x128xf32> to vector<32x128xbf16>
    %cst_36 = arith.constant dense<0.000000e+00> : vector<32x128xf32>
    %122 = tpu.matmul %0, %121, %cst_36 {dimension_numbers = #tpu.dot_dimension_numbers<[1], [0], [0], [1], [0, 0, 1, 1], [], []>} : vector<32x32xbf16>, vector<32x128xbf16>, vector<32x128xf32> -> vector<32x128xf32>
    %123 = arith.truncf %111 : vector<32x128xf32> to vector<32x128xbf16>
    %cst_37 = arith.constant dense<0.000000e+00> : vector<32x384xf32>
    %124 = tpu.matmul %123, %1, %cst_37 {dimension_numbers = #tpu.dot_dimension_numbers<[1], [0], [0], [1], [0, 0, 1, 1], [], []>} : vector<32x128xbf16>, vector<128x384xbf16>, vector<32x384xf32> -> vector<32x384xf32>
    %125 = vector.shape_cast %9 : vector<32x1xi1> to vector<32x1xi1>
    %126 = vector.broadcast %125 : vector<32x1xi1> to vector<32x384xi1>
    %127 = arith.select %126, %124, %5 : vector<32x384xi1>, vector<32x384xf32>
    %128 = vector.broadcast %4 : vector<1x384xf32> to vector<32x384xf32>
    %129 = arith.addf %127, %128 : vector<32x384xf32>
    %130 = vector.extract_strided_slice %129 {offsets = [0, 0], sizes = [32, 128], strides = [1, 1]} : vector<32x384xf32> to vector<32x128xf32>
    %131 = arith.negf %130 : vector<32x128xf32>
    %132 = math.exp %131 : vector<32x128xf32>
    %cst_38 = arith.constant 1.000000e+00 : f32
    %133 = vector.broadcast %cst_38 : f32 to vector<32x128xf32>
    %134 = arith.addf %133, %132 : vector<32x128xf32>
    %135 = arith.divf %133, %134 : vector<32x128xf32>
    %136 = vector.extract_strided_slice %129 {offsets = [0, 128], sizes = [32, 128], strides = [1, 1]} : vector<32x384xf32> to vector<32x128xf32>
    %137 = arith.negf %136 : vector<32x128xf32>
    %138 = math.exp %137 : vector<32x128xf32>
    %cst_39 = arith.constant 1.000000e+00 : f32
    %139 = vector.broadcast %cst_39 : f32 to vector<32x128xf32>
    %140 = arith.addf %139, %138 : vector<32x128xf32>
    %141 = arith.divf %139, %140 : vector<32x128xf32>
    %142 = vector.extract_strided_slice %129 {offsets = [0, 256], sizes = [32, 128], strides = [1, 1]} : vector<32x384xf32> to vector<32x128xf32>
    %143 = math.tanh %142 : vector<32x128xf32>
    %144 = vector.shape_cast %9 : vector<32x1xi1> to vector<32x1xi1>
    %145 = vector.broadcast %144 : vector<32x1xi1> to vector<32x128xi1>
    %146 = arith.select %145, %122, %109 : vector<32x128xi1>, vector<32x128xf32>
    %147 = arith.mulf %135, %143 : vector<32x128xf32>
    %148 = arith.addf %147, %146 : vector<32x128xf32>
    %149 = math.tanh %148 : vector<32x128xf32>
    %150 = arith.mulf %141, %149 : vector<32x128xf32>
    %151 = vector.broadcast %c2_i32 : i32 to vector<32x1xi32>
    %152 = arith.cmpi eq, %6, %151 : vector<32x1xi32>
    %153 = vector.shape_cast %152 : vector<32x1xi1> to vector<32x1xi1>
    %154 = vector.broadcast %153 : vector<32x1xi1> to vector<32x128xi1>
    %155 = arith.select %154, %150, %106 : vector<32x128xi1>, vector<32x128xf32>
    %156 = vector.shape_cast %152 : vector<32x1xi1> to vector<32x1xi1>
    %157 = vector.broadcast %156 : vector<32x1xi1> to vector<32x128xi1>
    %158 = arith.select %157, %148, %109 : vector<32x128xi1>, vector<32x128xf32>
    %c3_i32 = arith.constant 3 : i32
    %159 = arith.truncf %155 : vector<32x128xf32> to vector<32x128xbf16>
    %cst_40 = arith.constant dense<0.000000e+00> : vector<32x128xf32>
    %160 = tpu.matmul %0, %159, %cst_40 {dimension_numbers = #tpu.dot_dimension_numbers<[1], [0], [0], [1], [0, 0, 1, 1], [], []>} : vector<32x32xbf16>, vector<32x128xbf16>, vector<32x128xf32> -> vector<32x128xf32>
    %cst_41 = arith.constant dense<0.000000e+00> : vector<32x128xf32>
    %161 = tpu.matmul %159, %2, %cst_41 {dimension_numbers = #tpu.dot_dimension_numbers<[1], [0], [0], [1], [0, 0, 1, 1], [], []>} : vector<32x128xbf16>, vector<128x128xbf16>, vector<32x128xf32> -> vector<32x128xf32>
    %162 = vector.broadcast %3 : vector<1x128xf32> to vector<32x128xf32>
    %163 = arith.addf %161, %162 : vector<32x128xf32>
    %164 = arith.negf %163 : vector<32x128xf32>
    %165 = math.exp %164 : vector<32x128xf32>
    %cst_42 = arith.constant 1.000000e+00 : f32
    %166 = vector.broadcast %cst_42 : f32 to vector<32x128xf32>
    %167 = arith.addf %166, %165 : vector<32x128xf32>
    %168 = arith.divf %166, %167 : vector<32x128xf32>
    %169 = arith.mulf %168, %158 : vector<32x128xf32>
    %170 = arith.truncf %169 : vector<32x128xf32> to vector<32x128xbf16>
    %cst_43 = arith.constant dense<0.000000e+00> : vector<32x128xf32>
    %171 = tpu.matmul %0, %170, %cst_43 {dimension_numbers = #tpu.dot_dimension_numbers<[1], [0], [0], [1], [0, 0, 1, 1], [], []>} : vector<32x32xbf16>, vector<32x128xbf16>, vector<32x128xf32> -> vector<32x128xf32>
    %172 = arith.truncf %160 : vector<32x128xf32> to vector<32x128xbf16>
    %cst_44 = arith.constant dense<0.000000e+00> : vector<32x384xf32>
    %173 = tpu.matmul %172, %1, %cst_44 {dimension_numbers = #tpu.dot_dimension_numbers<[1], [0], [0], [1], [0, 0, 1, 1], [], []>} : vector<32x128xbf16>, vector<128x384xbf16>, vector<32x384xf32> -> vector<32x384xf32>
    %174 = vector.shape_cast %9 : vector<32x1xi1> to vector<32x1xi1>
    %175 = vector.broadcast %174 : vector<32x1xi1> to vector<32x384xi1>
    %176 = arith.select %175, %173, %5 : vector<32x384xi1>, vector<32x384xf32>
    %177 = vector.broadcast %4 : vector<1x384xf32> to vector<32x384xf32>
    %178 = arith.addf %176, %177 : vector<32x384xf32>
    %179 = vector.extract_strided_slice %178 {offsets = [0, 0], sizes = [32, 128], strides = [1, 1]} : vector<32x384xf32> to vector<32x128xf32>
    %180 = arith.negf %179 : vector<32x128xf32>
    %181 = math.exp %180 : vector<32x128xf32>
    %cst_45 = arith.constant 1.000000e+00 : f32
    %182 = vector.broadcast %cst_45 : f32 to vector<32x128xf32>
    %183 = arith.addf %182, %181 : vector<32x128xf32>
    %184 = arith.divf %182, %183 : vector<32x128xf32>
    %185 = vector.extract_strided_slice %178 {offsets = [0, 128], sizes = [32, 128], strides = [1, 1]} : vector<32x384xf32> to vector<32x128xf32>
    %186 = arith.negf %185 : vector<32x128xf32>
    %187 = math.exp %186 : vector<32x128xf32>
    %cst_46 = arith.constant 1.000000e+00 : f32
    %188 = vector.broadcast %cst_46 : f32 to vector<32x128xf32>
    %189 = arith.addf %188, %187 : vector<32x128xf32>
    %190 = arith.divf %188, %189 : vector<32x128xf32>
    %191 = vector.extract_strided_slice %178 {offsets = [0, 256], sizes = [32, 128], strides = [1, 1]} : vector<32x384xf32> to vector<32x128xf32>
    %192 = math.tanh %191 : vector<32x128xf32>
    %193 = vector.shape_cast %9 : vector<32x1xi1> to vector<32x1xi1>
    %194 = vector.broadcast %193 : vector<32x1xi1> to vector<32x128xi1>
    %195 = arith.select %194, %171, %158 : vector<32x128xi1>, vector<32x128xf32>
    %196 = arith.mulf %184, %192 : vector<32x128xf32>
    %197 = arith.addf %196, %195 : vector<32x128xf32>
    %198 = math.tanh %197 : vector<32x128xf32>
    %199 = arith.mulf %190, %198 : vector<32x128xf32>
    %200 = vector.broadcast %c3_i32 : i32 to vector<32x1xi32>
    %201 = arith.cmpi eq, %6, %200 : vector<32x1xi32>
    %202 = vector.shape_cast %201 : vector<32x1xi1> to vector<32x1xi1>
    %203 = vector.broadcast %202 : vector<32x1xi1> to vector<32x128xi1>
    %204 = arith.select %203, %199, %155 : vector<32x128xi1>, vector<32x128xf32>
    %205 = vector.shape_cast %201 : vector<32x1xi1> to vector<32x1xi1>
    %206 = vector.broadcast %205 : vector<32x1xi1> to vector<32x128xi1>
    %207 = arith.select %206, %197, %158 : vector<32x128xi1>, vector<32x128xf32>
    %c4_i32 = arith.constant 4 : i32
    %c0_47 = arith.constant 0 : index
    %c0_48 = arith.constant 0 : index
    %208 = vector.load %arg10[%c0_47, %c0_48] : memref<32x128xf32, #tpu.memory_space<vmem>>, vector<32x128xf32>
    tpu.vector_store %arg10[%c0_47, %c0_48], %204 {strides = array<i32>} : memref<32x128xf32, #tpu.memory_space<vmem>>, vector<32x128xf32>,
    return
  }
}

</mosaic_0001>

<llo_original>
// kernel: tpu_custom_call.1
$region0: #{tpu_custom_call.1}
  #allocation0 [shape = 'u32[]', space=smem, size = 0x4, offset = 0x4, fixed_abs, tag = 'smem constant byte address 0x4 - core index']
  #allocation1 [shape = 'u32[144,128]{1,0:T(1,128)}', space=vmem, size = 0x12000, scoped, tag = 'internal scratch']
  %s0 = inlined_call_operand.hbm [shape: bf16[32,32], index: 0, kind: input, shape index: {}]
  %s1 = inlined_call_operand.vmem [shape: s32[32,1], index: 1, kind: input, shape index: {}]
  %s2 = inlined_call_operand.vmem [shape: f32[32,1], index: 2, kind: input, shape index: {}]
  %s3 = inlined_call_operand.hbm [shape: f32[32,384], index: 3, kind: input, shape index: {}]
  %s4 = inlined_call_operand.hbm [shape: bf16[128,384], index: 4, kind: input, shape index: {}]
  %s5 = inlined_call_operand.vmem [shape: bf16[128,128], index: 5, kind: input, shape index: {}]
  %s6 = inlined_call_operand.hbm [shape: f32[1,128], index: 6, kind: input, shape index: {}]
  %s7 = inlined_call_operand.hbm [shape: f32[1,384], index: 7, kind: input, shape index: {}]
  %s8 = inlined_call_operand.vmem [shape: f32[32,128], index: 8, kind: input, shape index: {}]
  %s9 = inlined_call_operand.hbm [shape: f32[32,128], index: 9, kind: input, shape index: {}]
  %s10 = inlined_call_operand.hbm [shape: f32[32,128], index: 10, kind: output, shape index: {}]
  %s11 = sld [smem:[#allocation0]]
  $region74: #{tpu_custom_call.1} parent=0
    _
  %s13 = ssub.s32 1, %s11
  %s14 = scalar_select 0, %s13, %s11
  $region1: #{tpu_custom_call.1} parent=0
    #allocation2 [shape = 'u8[8192]{0}', space=vmem, size = 0x2000, scoped, tag = 'input window, operand 0, single buffered']
    #allocation3 [shape = 's32[1]{0}', space=sflag, size = 0x4, scoped, tag = 'scoped memory for tpu_custom_call.1']
    #allocation4 [shape = 's32[1]{0}', space=sflag, size = 0x4, scoped, tag = 'scoped memory for tpu_custom_call.1']
    #allocation5 [shape = 'u8[49152]{0}', space=vmem, size = 0xc000, scoped, tag = 'input window, operand 3, single buffered']
    #allocation6 [shape = 's32[1]{0}', space=sflag, size = 0x4, scoped, tag = 'scoped memory for tpu_custom_call.1']
    #allocation7 [shape = 'u8[98304]{0}', space=vmem, size = 0x18000, scoped, tag = 'input window, operand 4, single buffered']
    #allocation8 [shape = 'u8[512]{0}', space=vmem, size = 0x400, scoped, tag = 'input window, operand 6, single buffered']
    #allocation9 [shape = 's32[1]{0}', space=sflag, size = 0x4, scoped, tag = 'scoped memory for tpu_custom_call.1']
    #allocation10 [shape = 'u8[1536]{0}', space=vmem, size = 0x800, scoped, tag = 'input window, operand 7, single buffered']
    #allocation11 [shape = 'u8[16384]{0}', space=vmem, size = 0x4000, scoped, tag = 'input window, operand 9, single buffered']
    #allocation12 [shape = 's32[1]{0}', space=sflag, size = 0x4, scoped, tag = 'scoped memory for tpu_custom_call.1']
    #allocation13 [shape = 'u8[16384]{0}', space=vmem, size = 0x4000, scoped, tag = 'output window, operand 0, single buffered']
    %15 = vsyncpa [#allocation3], 0
    %16 = vsyncpa [#allocation6], 0
    %17 = vsyncpa [#allocation9], 0
    %18 = vsyncpa [#allocation12], 0
    %19 = vsyncpa [#allocation4], 0
    // Predicated region
    $region2: #{tpu_custom_call.1} parent=1 // pred_check
      _
    $region3: #{tpu_custom_call.1} parent=1 // pred_check_branch
      %21 = sbr.rel (0) target = $region5
    $region4: #{tpu_custom_call.1} parent=1 // pred_region
      %s23 = ssub.s32 256, 256
      %24 = vsyncadd [#allocation3], %s23
      %s25 = sshll.u32 [#allocation2], 4
      %s26 = int_to_ptr.vmem [resolvable:$true] %s25
      %31 = dma.hbm_to_vmem [thread:$0]  %s0, 256, %s26, [#allocation3], 64, 64, 4
    $region5: #{tpu_custom_call.1} parent=1 // pred_fallthru
      _
    // Predicated region
    $region6: #{tpu_custom_call.1} parent=1 // pred_check
      _
    $region7: #{tpu_custom_call.1} parent=1 // pred_check_branch
      %33 = sbr.rel (0) target = $region9
    $region8: #{tpu_custom_call.1} parent=1 // pred_region
      _
    $region9: #{tpu_custom_call.1} parent=1 // pred_fallthru
      _
    // Predicated region
    $region10: #{tpu_custom_call.1} parent=1 // pred_check
      _
    $region11: #{tpu_custom_call.1} parent=1 // pred_check_branch
      %35 = sbr.rel (0) target = $region13
    $region12: #{tpu_custom_call.1} parent=1 // pred_region
      _
    $region13: #{tpu_custom_call.1} parent=1 // pred_fallthru
      _
    // Predicated region
    $region14: #{tpu_custom_call.1} parent=1 // pred_check
      _
    $region15: #{tpu_custom_call.1} parent=1 // pred_check_branch
      %37 = sbr.rel (0) target = $region17
    $region16: #{tpu_custom_call.1} parent=1 // pred_region
      %s39 = ssub.s32 1536, 1536
      %40 = vsyncadd [#allocation6], %s39
      %s41 = sshll.u32 [#allocation5], 4
      %s42 = int_to_ptr.vmem [resolvable:$true] %s41
      %47 = dma.hbm_to_vmem [thread:$0]  %s3, 1536, %s42, [#allocation6], 384, 384, 24
    $region17: #{tpu_custom_call.1} parent=1 // pred_fallthru
      _
    // Predicated region
    $region18: #{tpu_custom_call.1} parent=1 // pred_check
      _
    $region19: #{tpu_custom_call.1} parent=1 // pred_check_branch
      %49 = sbr.rel (0) target = $region21
    $region20: #{tpu_custom_call.1} parent=1 // pred_region
      %s51 = ssub.s32 3072, 3072
      %52 = vsyncadd [#allocation6], %s51
      %s53 = sshll.u32 [#allocation7], 4
      %s54 = int_to_ptr.vmem [resolvable:$true] %s53
      %59 = dma.hbm_to_vmem [thread:$0]  %s4, 3072, %s54, [#allocation6], 192, 192, 12
    $region21: #{tpu_custom_call.1} parent=1 // pred_fallthru
      _
    // Predicated region
    $region22: #{tpu_custom_call.1} parent=1 // pred_check
      _
    $region23: #{tpu_custom_call.1} parent=1 // pred_check_branch
      %61 = sbr.rel (0) target = $region25
    $region24: #{tpu_custom_call.1} parent=1 // pred_region
      _
    $region25: #{tpu_custom_call.1} parent=1 // pred_fallthru
      _
    // Predicated region
    $region26: #{tpu_custom_call.1} parent=1 // pred_check
      _
    $region27: #{tpu_custom_call.1} parent=1 // pred_check_branch
      %63 = sbr.rel (0) target = $region29
    $region28: #{tpu_custom_call.1} parent=1 // pred_region
      %s65 = ssub.s32 16, 16
      %66 = vsyncadd [#allocation9], %s65
      %s68 = sshll.u32 [#allocation8], 4
      %s69 = int_to_ptr.vmem [resolvable:$true] %s68
      %71 = dma.hbm_to_vmem [thread:$0]  %s6, 16, %s69, [#allocation9]
    $region29: #{tpu_custom_call.1} parent=1 // pred_fallthru
      _
    // Predicated region
    $region30: #{tpu_custom_call.1} parent=1 // pred_check
      _
    $region31: #{tpu_custom_call.1} parent=1 // pred_check_branch
      %73 = sbr.rel (0) target = $region33
    $region32: #{tpu_custom_call.1} parent=1 // pred_region
      %s75 = ssub.s32 48, 48
      %76 = vsyncadd [#allocation9], %s75
      %s78 = sshll.u32 [#allocation10], 4
      %s79 = int_to_ptr.vmem [resolvable:$true] %s78
      %81 = dma.hbm_to_vmem [thread:$0]  %s7, 48, %s79, [#allocation9]
    $region33: #{tpu_custom_call.1} parent=1 // pred_fallthru
      _
    // Predicated region
    $region34: #{tpu_custom_call.1} parent=1 // pred_check
      _
    $region35: #{tpu_custom_call.1} parent=1 // pred_check_branch
      %83 = sbr.rel (0) target = $region37
    $region36: #{tpu_custom_call.1} parent=1 // pred_region
      _
    $region37: #{tpu_custom_call.1} parent=1 // pred_fallthru
      _
    // Predicated region
    $region38: #{tpu_custom_call.1} parent=1 // pred_check
      _
    $region39: #{tpu_custom_call.1} parent=1 // pred_check_branch
      %85 = sbr.rel (0) target = $region41
    $region40: #{tpu_custom_call.1} parent=1 // pred_region
      %s87 = ssub.s32 512, 512
      %88 = vsyncadd [#allocation12], %s87
      %s89 = sshll.u32 [#allocation11], 4
      %s90 = int_to_ptr.vmem [resolvable:$true] %s89
      %95 = dma.hbm_to_vmem [thread:$0]  %s9, 512, %s90, [#allocation12], 128, 128, 8
    $region41: #{tpu_custom_call.1} parent=1 // pred_fallthru
      _
    // Predicated region
    $region42: #{tpu_custom_call.1} parent=1 // pred_check
      _
    $region43: #{tpu_custom_call.1} parent=1 // pred_check_branch
      %97 = sbr.rel (0) target = $region45
    $region44: #{tpu_custom_call.1} parent=1 // pred_region
      %98 = dma.done [#allocation3], 256
    $region45: #{tpu_custom_call.1} parent=1 // pred_fallthru
      _
    // Predicated region
    $region46: #{tpu_custom_call.1} parent=1 // pred_check
      _
    $region47: #{tpu_custom_call.1} parent=1 // pred_check_branch
      %100 = sbr.rel (0) target = $region49
    $region48: #{tpu_custom_call.1} parent=1 // pred_region
      %101 = dma.done [#allocation6], 1536
    $region49: #{tpu_custom_call.1} parent=1 // pred_fallthru
      _
    // Predicated region
    $region50: #{tpu_custom_call.1} parent=1 // pred_check
      _
    $region51: #{tpu_custom_call.1} parent=1 // pred_check_branch
      %103 = sbr.rel (0) target = $region53
    $region52: #{tpu_custom_call.1} parent=1 // pred_region
      %104 = dma.done [#allocation6], 3072
    $region53: #{tpu_custom_call.1} parent=1 // pred_fallthru
      _
    // Predicated region
    $region54: #{tpu_custom_call.1} parent=1 // pred_check
      _
    $region55: #{tpu_custom_call.1} parent=1 // pred_check_branch
      %106 = sbr.rel (0) target = $region57
    $region56: #{tpu_custom_call.1} parent=1 // pred_region
      %107 = dma.done [#allocation9], 16
    $region57: #{tpu_custom_call.1} parent=1 // pred_fallthru
      _
    // Predicated region
    $region58: #{tpu_custom_call.1} parent=1 // pred_check
      _
    $region59: #{tpu_custom_call.1} parent=1 // pred_check_branch
      %109 = sbr.rel (0) target = $region61
    $region60: #{tpu_custom_call.1} parent=1 // pred_region
      %110 = dma.done [#allocation9], 48
    $region61: #{tpu_custom_call.1} parent=1 // pred_fallthru
      _
    // Predicated region
    $region62: #{tpu_custom_call.1} parent=1 // pred_check
      _
    $region63: #{tpu_custom_call.1} parent=1 // pred_check_branch
      %112 = sbr.rel (0) target = $region65
    $region64: #{tpu_custom_call.1} parent=1 // pred_region
      %113 = dma.done [#allocation12], 512
    $region65: #{tpu_custom_call.1} parent=1 // pred_fallthru
      _
    %v115 = vld [vmem:[#allocation2] sm:$0xf]
    %v116 = vld [vmem:[#allocation2 + $0x4] sm:$0xf]
    %v117 = vld [vmem:[#allocation2 + $0x8] sm:$0xf]
    %v118 = vld [vmem:[#allocation2 + $0xc] sm:$0xf]
    %v119 = vld [vmem:[#allocation7] sm:$0xff]
    %v120 = vld [vmem:[#allocation7 + $0x8] sm:$0xf]
    %v121 = vld [vmem:[#allocation7 + $0xc] sm:$0xff]
    %v122 = vld [vmem:[#allocation7 + $0x14] sm:$0xf]
    %v123 = vld [vmem:[#allocation7 + $0x18] sm:$0xff]
    %v124 = vld [vmem:[#allocation7 + $0x20] sm:$0xf]
    %v125 = vld [vmem:[#allocation7 + $0x24] sm:$0xff]
    %v126 = vld [vmem:[#allocation7 + $0x2c] sm:$0xf]
    %v127 = vld [vmem:[#allocation7 + $0x30] sm:$0xff]
    %v128 = vld [vmem:[#allocation7 + $0x38] sm:$0xf]
    %v129 = vld [vmem:[#allocation7 + $0x3c] sm:$0xff]
    %v130 = vld [vmem:[#allocation7 + $0x44] sm:$0xf]
    %v131 = vld [vmem:[#allocation7 + $0x48] sm:$0xff]
    %v132 = vld [vmem:[#allocation7 + $0x50] sm:$0xf]
    %v133 = vld [vmem:[#allocation7 + $0x54] sm:$0xff]
    %v134 = vld [vmem:[#allocation7 + $0x5c] sm:$0xf]
    %v135 = vld [vmem:[#allocation7 + $0x60] sm:$0xff]
    %v136 = vld [vmem:[#allocation7 + $0x68] sm:$0xf]
    %v137 = vld [vmem:[#allocation7 + $0x6c] sm:$0xff]
    %v138 = vld [vmem:[#allocation7 + $0x74] sm:$0xf]
    %v139 = vld [vmem:[#allocation7 + $0x78] sm:$0xff]
    %v140 = vld [vmem:[#allocation7 + $0x80] sm:$0xf]
    %v141 = vld [vmem:[#allocation7 + $0x84] sm:$0xff]
    %v142 = vld [vmem:[#allocation7 + $0x8c] sm:$0xf]
    %v143 = vld [vmem:[#allocation7 + $0x90] sm:$0xff]
    %v144 = vld [vmem:[#allocation7 + $0x98] sm:$0xf]
    %v145 = vld [vmem:[#allocation7 + $0x9c] sm:$0xff]
    %v146 = vld [vmem:[#allocation7 + $0xa4] sm:$0xf]
    %v147 = vld [vmem:[#allocation7 + $0xa8] sm:$0xff]
    %v148 = vld [vmem:[#allocation7 + $0xb0] sm:$0xf]
    %v149 = vld [vmem:[#allocation7 + $0xb4] sm:$0xff]
    %v150 = vld [vmem:[#allocation7 + $0xbc] sm:$0xf]
    %v151 = vld [vmem:[%s5] sm:$0xf]
    %v152 = vld [vmem:[%s5 + $0x4] sm:$0xf]
    %v153 = vld [vmem:[%s5 + $0x8] sm:$0xf]
    %v154 = vld [vmem:[%s5 + $0xc] sm:$0xf]
    %v155 = vld [vmem:[%s5 + $0x10] sm:$0xf]
    %v156 = vld [vmem:[%s5 + $0x14] sm:$0xf]
    %v157 = vld [vmem:[%s5 + $0x18] sm:$0xf]
    %v158 = vld [vmem:[%s5 + $0x1c] sm:$0xf]
    %v159 = vld [vmem:[%s5 + $0x20] sm:$0xf]
    %v160 = vld [vmem:[%s5 + $0x24] sm:$0xf]
    %v161 = vld [vmem:[%s5 + $0x28] sm:$0xf]
    %v162 = vld [vmem:[%s5 + $0x2c] sm:$0xf]
    %v163 = vld [vmem:[%s5 + $0x30] sm:$0xf]
    %v164 = vld [vmem:[%s5 + $0x34] sm:$0xf]
    %v165 = vld [vmem:[%s5 + $0x38] sm:$0xf]
    %v166 = vld [vmem:[%s5 + $0x3c] sm:$0xf]
    %v167 = vld [vmem:[#allocation8] sm:$0x1]
    %v168 = vld [vmem:[#allocation10] sm:$0x7]
    %v169 = vld [vmem:[#allocation5] sm:$0xff]
    %v170 = vld [vmem:[#allocation5 + $0x8] sm:$0xff]
    %v171 = vld [vmem:[#allocation5 + $0x10] sm:$0xff]
    %v172 = vld [vmem:[#allocation5 + $0x18] sm:$0xff]
    %v173 = vld [vmem:[#allocation5 + $0x20] sm:$0xff]
    %v174 = vld [vmem:[#allocation5 + $0x28] sm:$0xff]
    %v175 = vld [vmem:[#allocation5 + $0x30] sm:$0xff]
    %v176 = vld [vmem:[#allocation5 + $0x38] sm:$0xff]
    %v177 = vld [vmem:[#allocation5 + $0x40] sm:$0xff]
    %v178 = vld [vmem:[#allocation5 + $0x48] sm:$0xff]
    %v179 = vld [vmem:[#allocation5 + $0x50] sm:$0xff]
    %v180 = vld [vmem:[#allocation5 + $0x58] sm:$0xff]
    %v181 = vld [vmem:[%s1] sm:$0xff]
    %v182 = vld [vmem:[%s1 + $0x8] sm:$0xff]
    %v183 = vld [vmem:[%s1 + $0x10] sm:$0xff]
    %v184 = vld [vmem:[%s1 + $0x18] sm:$0xff]
    %v185 = vld [vmem:[%s2] sm:$0xff]
    %v186 = vld [vmem:[%s2 + $0x8] sm:$0xff]
    %v187 = vld [vmem:[%s2 + $0x10] sm:$0xff]
    %v188 = vld [vmem:[%s2 + $0x18] sm:$0xff]
    %vm189 = vcmp.gt.f32.partialorder %v185, 0.5
    %vm190 = vcmp.gt.f32.partialorder %v186, 0.5
    %vm191 = vcmp.gt.f32.partialorder %v187, 0.5
    %vm192 = vcmp.gt.f32.partialorder %v188, 0.5
    %v193 = vld [vmem:[%s8] sm:$0xff]
    %v194 = vld [vmem:[%s8 + $0x8] sm:$0xff]
    %v195 = vld [vmem:[%s8 + $0x10] sm:$0xff]
    %v196 = vld [vmem:[%s8 + $0x18] sm:$0xff]
    %v197 = vld [vmem:[#allocation11] sm:$0xff]
    %v198 = vld [vmem:[#allocation11 + $0x8] sm:$0xff]
    %v199 = vld [vmem:[#allocation11 + $0x10] sm:$0xff]
    %v200 = vld [vmem:[#allocation11 + $0x18] sm:$0xff]
    %v201 = vpack.c.bf16 %v194, %v193
    %v202 = vpack.c.bf16 %v196, %v195
    %v207 = vunpack.c.l.b16 %v115
    %v208 = vunpack.c.l.b16 %v116
    %v209 = vunpack.c.l.b16 %v117
    %v210 = vunpack.c.l.b16 %v118
    %v211 = vpack.c.b16 %v208, %v207
    %v212 = vpack.c.b16 %v210, %v209
    %vm213 = vcmask 261120
    %v215 = vsel %vm213, %v211, 0
    %v218 = vsel %vm213, %v212, 0
    %220 = vmatprep.subr.bf16.mxu0 0
    %221 = vmatpush1.bf16.msra.mxu0 %v201
    %222 = vmatprep.subr.bf16.mxu0 0
    %223 = vmatpush1.bf16.msra.mxu0 %v202
    %224 = vmatprep.subr.bf16.mxu0 0
    %225 = vmatpush1.bf16.msra.mxu0 0
    %226 = vmatprep.subr.bf16.mxu0 0
    %227 = vmatpush1.bf16.msra.mxu0 0
    %228 = vmatprep.subr.bf16.mxu0 0
    %229 = vmatpush1.bf16.msra.mxu0 0
    %230 = vmatprep.subr.bf16.mxu0 0
    %231 = vmatpush1.bf16.msra.mxu0 0
    %232 = vmatprep.subr.bf16.mxu0 0
    %233 = vmatpush1.bf16.msra.mxu0 0
    %234 = vmatprep.subr.bf16.mxu0 0
    %235 = vmatpush1.bf16.msra.mxu0 0
    %236 = vmatprep.subr.bf16.mxu0 0
    %237 = vmatpush1.bf16.msra.mxu0 0
    %238 = vmatprep.subr.bf16.mxu0 0
    %239 = vmatpush1.bf16.msra.mxu0 0
    %240 = vmatprep.subr.bf16.mxu0 0
    %241 = vmatpush1.bf16.msra.mxu0 0
    %242 = vmatprep.subr.bf16.mxu0 0
    %243 = vmatpush1.bf16.msra.mxu0 0
    %244 = vmatprep.subr.bf16.mxu0 0
    %245 = vmatpush1.bf16.msra.mxu0 0
    %246 = vmatprep.subr.bf16.mxu0 0
    %247 = vmatpush1.bf16.msra.mxu0 0
    %248 = vmatprep.subr.bf16.mxu0 0
    %249 = vmatpush1.bf16.msra.mxu0 0
    %250 = vmatprep.subr.bf16.mxu0 0
    %251 = vmatpush1.bf16.msra.mxu0 0
    %252 = vmatprep.mubr.bf16.mxu0 0
    %253 = vmatmul.mubr.bf16.gmra.mrb[0].mxu0 %v215
    %v254 = vpop.f32.mrb[0].mxu0
    %v255 = vadd.f32 0.0, %v254
    %v256 = vpop.f32.mrb[0].mxu0
    %v257 = vpop.f32.mrb[0].mxu0
    %v258 = vadd.f32 0.0, %v257
    %v259 = vpop.f32.mrb[0].mxu0
    %260 = vmatprep.mubr.bf16.mxu0 0
    %261 = vmatmul.mubr.bf16.gmra.mrb[0].mxu0 %v218
    %v262 = vpop.f32.mrb[0].mxu0
    %v263 = vadd.f32 0.0, %v262
    %v264 = vpop.f32.mrb[0].mxu0
    %v265 = vpop.f32.mrb[0].mxu0
    %v266 = vadd.f32 0.0, %v265
    %v267 = vpop.f32.mrb[0].mxu0
    %268 = vdwg.mxu0
    %v270 = vlaneseq
    %v271 = vshrl.u32 %v270, 7
    %v272 = vsub.s32 0, %v271
    %v273 = vrot.slane %v167, %v272
    %v291 = vunpack.c.l.b16 %v151
    %v292 = vunpack.c.l.b16 %v152
    %v293 = vunpack.c.l.b16 %v153
    %v294 = vunpack.c.l.b16 %v154
    %v295 = vunpack.c.l.b16 %v155
    %v296 = vunpack.c.l.b16 %v156
    %v297 = vunpack.c.l.b16 %v157
    %v298 = vunpack.c.l.b16 %v158
    %v299 = vunpack.c.l.b16 %v159
    %v300 = vunpack.c.l.b16 %v160
    %v301 = vunpack.c.l.b16 %v161
    %v302 = vunpack.c.l.b16 %v162
    %v303 = vunpack.c.l.b16 %v163
    %v304 = vunpack.c.l.b16 %v164
    %v305 = vunpack.c.l.b16 %v165
    %v306 = vunpack.c.l.b16 %v166
    %v307 = vpack.c.b16 %v292, %v291
    %v308 = vpack.c.b16 %v294, %v293
    %v309 = vpack.c.b16 %v296, %v295
    %v310 = vpack.c.b16 %v298, %v297
    %v311 = vpack.c.b16 %v300, %v299
    %v312 = vpack.c.b16 %v302, %v301
    %v313 = vpack.c.b16 %v304, %v303
    %v314 = vpack.c.b16 %v306, %v305
    %323 = vmatprep.subr.bf16.mxu0 0
    %324 = vmatpush1.bf16.msra.mxu0 %v307
    %325 = vmatprep.subr.bf16.mxu0 0
    %326 = vmatpush1.bf16.msra.mxu0 %v308
    %327 = vmatprep.subr.bf16.mxu0 0
    %328 = vmatpush1.bf16.msra.mxu0 %v309
    %329 = vmatprep.subr.bf16.mxu0 0
    %330 = vmatpush1.bf16.msra.mxu0 %v310
    %331 = vmatprep.subr.bf16.mxu0 0
    %332 = vmatpush1.bf16.msra.mxu0 %v311
    %333 = vmatprep.subr.bf16.mxu0 0
    %334 = vmatpush1.bf16.msra.mxu0 %v312
    %335 = vmatprep.subr.bf16.mxu0 0
    %336 = vmatpush1.bf16.msra.mxu0 %v313
    %337 = vmatprep.subr.bf16.mxu0 0
    %338 = vmatpush1.bf16.msra.mxu0 %v314
    %339 = vmatprep.subr.bf16.mxu0 0
    %340 = vmatpush1.bf16.msra.mxu0 0
    %341 = vmatprep.subr.bf16.mxu0 0
    %342 = vmatpush1.bf16.msra.mxu0 0
    %343 = vmatprep.subr.bf16.mxu0 0
    %344 = vmatpush1.bf16.msra.mxu0 0
    %345 = vmatprep.subr.bf16.mxu0 0
    %346 = vmatpush1.bf16.msra.mxu0 0
    %347 = vmatprep.subr.bf16.mxu0 0
    %348 = vmatpush1.bf16.msra.mxu0 0
    %349 = vmatprep.subr.bf16.mxu0 0
    %350 = vmatpush1.bf16.msra.mxu0 0
    %351 = vmatprep.subr.bf16.mxu0 0
    %352 = vmatpush1.bf16.msra.mxu0 0
    %353 = vmatprep.subr.bf16.mxu0 0
    %354 = vmatpush1.bf16.msra.mxu0 0
    %355 = vmatprep.mubr.bf16.mxu0 0
    %356 = vmatmul.mubr.bf16.gmra.mrb[0].mxu0 %v201
    %v357 = vpop.f32.mrb[0].mxu0
    %v358 = vadd.f32 %v273, %v357
    %v359 = vpop.f32.mrb[0].mxu0
    %v360 = vpop.f32.mrb[0].mxu0
    %v361 = vadd.f32 %v273, %v360
    %v362 = vpop.f32.mrb[0].mxu0
    %363 = vmatprep.mubr.bf16.mxu0 0
    %364 = vmatmul.mubr.bf16.gmra.mrb[0].mxu0 %v202
    %v365 = vpop.f32.mrb[0].mxu0
    %v366 = vadd.f32 %v273, %v365
    %v367 = vpop.f32.mrb[0].mxu0
    %v368 = vpop.f32.mrb[0].mxu0
    %v369 = vadd.f32 %v273, %v368
    %v370 = vpop.f32.mrb[0].mxu0
    %371 = vdwg.mxu0
    %v372 = vxor.u32 %v358, 2147483648
    %v373 = vxor.u32 %v361, 2147483648
    %v374 = vxor.u32 %v366, 2147483648
    %v375 = vxor.u32 %v369, 2147483648
    %v376 = vmul.f32 %v372, 1.442695
    %v377 = vpow.pop %v376
    %v378 = vmul.f32 %v373, 1.442695
    %v379 = vpow.pop %v378
    %v380 = vmul.f32 %v374, 1.442695
    %v381 = vpow.pop %v380
    %v382 = vmul.f32 %v375, 1.442695
    %v383 = vpow.pop %v382
    %v384 = vadd.f32 %v377, 1.0
    %v385 = vadd.f32 %v379, 1.0
    %v386 = vadd.f32 %v381, 1.0
    %v387 = vadd.f32 %v383, 1.0
    %v388 = vrcp.pop %v384
    %v389 = vmul.f32 1.0, %v388
    %v390 = vrcp.pop %v385
    %v391 = vmul.f32 1.0, %v390
    %v392 = vrcp.pop %v386
    %v393 = vmul.f32 1.0, %v392
    %v394 = vrcp.pop %v387
    %v395 = vmul.f32 1.0, %v394
    %v396 = vmul.f32 %v389, %v197
    %v397 = vmul.f32 %v391, %v198
    %v398 = vmul.f32 %v393, %v199
    %v399 = vmul.f32 %v395, %v200
    %v400 = vpack.c.bf16 %v397, %v396
    %v401 = vpack.c.bf16 %v399, %v398
    %402 = vmatprep.subr.bf16.mxu0 0
    %403 = vmatpush1.bf16.msra.mxu0 %v400
    %404 = vmatprep.subr.bf16.mxu0 0
    %405 = vmatpush1.bf16.msra.mxu0 %v401
    %406 = vmatprep.subr.bf16.mxu0 0
    %407 = vmatpush1.bf16.msra.mxu0 0
    %408 = vmatprep.subr.bf16.mxu0 0
    %409 = vmatpush1.bf16.msra.mxu0 0
    %410 = vmatprep.subr.bf16.mxu0 0
    %411 = vmatpush1.bf16.msra.mxu0 0
    %412 = vmatprep.subr.bf16.mxu0 0
    %413 = vmatpush1.bf16.msra.mxu0 0
    %414 = vmatprep.subr.bf16.mxu0 0
    %415 = vmatpush1.bf16.msra.mxu0 0
    %416 = vmatprep.subr.bf16.mxu0 0
    %417 = vmatpush1.bf16.msra.mxu0 0
    %418 = vmatprep.subr.bf16.mxu0 0
    %419 = vmatpush1.bf16.msra.mxu0 0
    %420 = vmatprep.subr.bf16.mxu0 0
    %421 = vmatpush1.bf16.msra.mxu0 0
    %422 = vmatprep.subr.bf16.mxu0 0
    %423 = vmatpush1.bf16.msra.mxu0 0
    %424 = vmatprep.subr.bf16.mxu0 0
    %425 = vmatpush1.bf16.msra.mxu0 0
    %426 = vmatprep.subr.bf16.mxu0 0
    %427 = vmatpush1.bf16.msra.mxu0 0
    %428 = vmatprep.subr.bf16.mxu0 0
    %429 = vmatpush1.bf16.msra.mxu0 0
    %430 = vmatprep.subr.bf16.mxu0 0
    %431 = vmatpush1.bf16.msra.mxu0 0
    %432 = vmatprep.subr.bf16.mxu0 0
    %433 = vmatpush1.bf16.msra.mxu0 0
    %434 = vmatprep.mubr.bf16.mxu0 0
    %435 = vmatmul.mubr.bf16.gmra.mrb[0].mxu0 %v215
    %v436 = vpop.f32.mrb[0].mxu0
    %v437 = vadd.f32 0.0, %v436
    %v438 = vpop.f32.mrb[0].mxu0
    %v439 = vpop.f32.mrb[0].mxu0
    %v440 = vadd.f32 0.0, %v439
    %v441 = vpop.f32.mrb[0].mxu0
    %442 = vmatprep.mubr.bf16.mxu0 0
    %443 = vmatmul.mubr.bf16.gmra.mrb[0].mxu0 %v218
    %v444 = vpop.f32.mrb[0].mxu0
    %v445 = vadd.f32 0.0, %v444
    %v446 = vpop.f32.mrb[0].mxu0
    %v447 = vpop.f32.mrb[0].mxu0
    %v448 = vadd.f32 0.0, %v447
    %v449 = vpop.f32.mrb[0].mxu0
    %450 = vdwg.mxu0
    %v451 = vpack.c.bf16 %v258, %v255
    %v452 = vpack.c.bf16 %v266, %v263
    %v485 = vunpack.c.l.b16 %v119
    %v486 = vunpack.c.h.b16 %v119
    %v487 = vunpack.c.l.b16 %v120
    %v488 = vunpack.c.l.b16 %v121
    %v489 = vunpack.c.h.b16 %v121
    %v490 = vunpack.c.l.b16 %v122
    %v491 = vunpack.c.l.b16 %v123
    %v492 = vunpack.c.h.b16 %v123
    %v493 = vunpack.c.l.b16 %v124
    %v494 = vunpack.c.l.b16 %v125
    %v495 = vunpack.c.h.b16 %v125
    %v496 = vunpack.c.l.b16 %v126
    %v497 = vunpack.c.l.b16 %v127
    %v498 = vunpack.c.h.b16 %v127
    %v499 = vunpack.c.l.b16 %v128
    %v500 = vunpack.c.l.b16 %v129
    %v501 = vunpack.c.h.b16 %v129
    %v502 = vunpack.c.l.b16 %v130
    %v503 = vunpack.c.l.b16 %v131
    %v504 = vunpack.c.h.b16 %v131
    %v505 = vunpack.c.l.b16 %v132
    %v506 = vunpack.c.l.b16 %v133
    %v507 = vunpack.c.h.b16 %v133
    %v508 = vunpack.c.l.b16 %v134
    %v509 = vunpack.c.l.b16 %v135
    %v510 = vunpack.c.h.b16 %v135
    %v511 = vunpack.c.l.b16 %v136
    %v512 = vunpack.c.l.b16 %v137
    %v513 = vunpack.c.h.b16 %v137
    %v514 = vunpack.c.l.b16 %v138
    %v515 = vunpack.c.l.b16 %v139
    %v516 = vunpack.c.h.b16 %v139
    %v517 = vunpack.c.l.b16 %v140
    %v518 = vunpack.c.l.b16 %v141
    %v519 = vunpack.c.h.b16 %v141
    %v520 = vunpack.c.l.b16 %v142
    %v521 = vunpack.c.l.b16 %v143
    %v522 = vunpack.c.h.b16 %v143
    %v523 = vunpack.c.l.b16 %v144
    %v524 = vunpack.c.l.b16 %v145
    %v525 = vunpack.c.h.b16 %v145
    %v526 = vunpack.c.l.b16 %v146
    %v527 = vunpack.c.l.b16 %v147
    %v528 = vunpack.c.h.b16 %v147
    %v529 = vunpack.c.l.b16 %v148
    %v530 = vunpack.c.l.b16 %v149
    %v531 = vunpack.c.h.b16 %v149
    %v532 = vunpack.c.l.b16 %v150
    %v533 = vpack.c.b16 %v488, %v485
    %v534 = vpack.c.b16 %v489, %v486
    %v535 = vpack.c.b16 %v490, %v487
    %v536 = vpack.c.b16 %v494, %v491
    %v537 = vpack.c.b16 %v495, %v492
    %v538 = vpack.c.b16 %v496, %v493
    %v539 = vpack.c.b16 %v500, %v497
    %v540 = vpack.c.b16 %v501, %v498
    %v541 = vpack.c.b16 %v502, %v499
    %v542 = vpack.c.b16 %v506, %v503
    %v543 = vpack.c.b16 %v507, %v504
    %v544 = vpack.c.b16 %v508, %v505
    %v545 = vpack.c.b16 %v512, %v509
    %v546 = vpack.c.b16 %v513, %v510
    %v547 = vpack.c.b16 %v514, %v511
    %v548 = vpack.c.b16 %v518, %v515
    %v549 = vpack.c.b16 %v519, %v516
    %v550 = vpack.c.b16 %v520, %v517
    %v551 = vpack.c.b16 %v524, %v521
    %v552 = vpack.c.b16 %v525, %v522
    %v553 = vpack.c.b16 %v526, %v523
    %v554 = vpack.c.b16 %v530, %v527
    %v555 = vpack.c.b16 %v531, %v528
    %v556 = vpack.c.b16 %v532, %v529
    %581 = vmatprep.subr.bf16.mxu0 %v534
    %582 = vmatpush1.bf16.msra.mxu0 %v533
    %583 = vmatprep.subr.bf16.mxu0 %v537
    %584 = vmatpush1.bf16.msra.mxu0 %v536
    %585 = vmatprep.subr.bf16.mxu0 %v540
    %586 = vmatpush1.bf16.msra.mxu0 %v539
    %587 = vmatprep.subr.bf16.mxu0 %v543
    %588 = vmatpush1.bf16.msra.mxu0 %v542
    %589 = vmatprep.subr.bf16.mxu0 %v546
    %590 = vmatpush1.bf16.msra.mxu0 %v545
    %591 = vmatprep.subr.bf16.mxu0 %v549
    %592 = vmatpush1.bf16.msra.mxu0 %v548
    %593 = vmatprep.subr.bf16.mxu0 %v552
    %594 = vmatpush1.bf16.msra.mxu0 %v551
    %595 = vmatprep.subr.bf16.mxu0 %v555
    %596 = vmatpush1.bf16.msra.mxu0 %v554
    %597 = vmatprep.subr.bf16.mxu0 0
    %598 = vmatpush1.bf16.msra.mxu0 0
    %599 = vmatprep.subr.bf16.mxu0 0
    %600 = vmatpush1.bf16.msra.mxu0 0
    %601 = vmatprep.subr.bf16.mxu0 0
    %602 = vmatpush1.bf16.msra.mxu0 0
    %603 = vmatprep.subr.bf16.mxu0 0
    %604 = vmatpush1.bf16.msra.mxu0 0
    %605 = vmatprep.subr.bf16.mxu0 0
    %606 = vmatpush1.bf16.msra.mxu0 0
    %607 = vmatprep.subr.bf16.mxu0 0
    %608 = vmatpush1.bf16.msra.mxu0 0
    %609 = vmatprep.subr.bf16.mxu0 0
    %610 = vmatpush1.bf16.msra.mxu0 0
    %611 = vmatprep.subr.bf16.mxu0 0
    %612 = vmatpush1.bf16.msra.mxu0 0
    %613 = vmatprep.mubr.bf16.mxu0 0
    %614 = vmatmul.mubr.bf16.gmra.mrb[0].mxu0 %v451
    %v615 = vpop.f32.mrb[0].mxu0
    %v616 = vadd.f32 0.0, %v615
    %v617 = vpop.f32.mrb[0].mxu0
    %v618 = vadd.f32 0.0, %v617
    %v619 = vpop.f32.mrb[0].mxu0
    %v620 = vadd.f32 0.0, %v619
    %v621 = vpop.f32.mrb[0].mxu0
    %v622 = vadd.f32 0.0, %v621
    %623 = vmatprep.mubr.bf16.mxu0 0
    %624 = vmatmul.mubr.bf16.gmra.mrb[0].mxu0 %v452
    %v625 = vpop.f32.mrb[0].mxu0
    %v626 = vadd.f32 0.0, %v625
    %v627 = vpop.f32.mrb[0].mxu0
    %v628 = vadd.f32 0.0, %v627
    %v629 = vpop.f32.mrb[0].mxu0
    %v630 = vadd.f32 0.0, %v629
    %v631 = vpop.f32.mrb[0].mxu0
    %v632 = vadd.f32 0.0, %v631
    %633 = vdwg.mxu0
    %634 = vmatprep.subr.bf16.mxu0 0
    %635 = vmatpush1.bf16.msra.mxu0 %v535
    %636 = vmatprep.subr.bf16.mxu0 0
    %637 = vmatpush1.bf16.msra.mxu0 %v538
    %638 = vmatprep.subr.bf16.mxu0 0
    %639 = vmatpush1.bf16.msra.mxu0 %v541
    %640 = vmatprep.subr.bf16.mxu0 0
    %641 = vmatpush1.bf16.msra.mxu0 %v544
    %642 = vmatprep.subr.bf16.mxu0 0
    %643 = vmatpush1.bf16.msra.mxu0 %v547
    %644 = vmatprep.subr.bf16.mxu0 0
    %645 = vmatpush1.bf16.msra.mxu0 %v550
    %646 = vmatprep.subr.bf16.mxu0 0
    %647 = vmatpush1.bf16.msra.mxu0 %v553
    %648 = vmatprep.subr.bf16.mxu0 0
    %649 = vmatpush1.bf16.msra.mxu0 %v556
    %650 = vmatprep.subr.bf16.mxu0 0
    %651 = vmatpush1.bf16.msra.mxu0 0
    %652 = vmatprep.subr.bf16.mxu0 0
    %653 = vmatpush1.bf16.msra.mxu0 0
    %654 = vmatprep.subr.bf16.mxu0 0
    %655 = vmatpush1.bf16.msra.mxu0 0
    %656 = vmatprep.subr.bf16.mxu0 0
    %657 = vmatpush1.bf16.msra.mxu0 0
    %658 = vmatprep.subr.bf16.mxu0 0
    %659 = vmatpush1.bf16.msra.mxu0 0
    %660 = vmatprep.subr.bf16.mxu0 0
    %661 = vmatpush1.bf16.msra.mxu0 0
    %662 = vmatprep.subr.bf16.mxu0 0
    %663 = vmatpush1.bf16.msra.mxu0 0
    %664 = vmatprep.subr.bf16.mxu0 0
    %665 = vmatpush1.bf16.msra.mxu0 0
    %666 = vmatprep.mubr.bf16.mxu0 0
    %667 = vmatmul.mubr.bf16.gmra.mrb[0].mxu0 %v451
    %v668 = vpop.f32.mrb[0].mxu0
    %v669 = vadd.f32 0.0, %v668
    %v670 = vpop.f32.mrb[0].mxu0
    %v671 = vpop.f32.mrb[0].mxu0
    %v672 = vadd.f32 0.0, %v671
    %v673 = vpop.f32.mrb[0].mxu0
    %674 = vmatprep.mubr.bf16.mxu0 0
    %675 = vmatmul.mubr.bf16.gmra.mrb[0].mxu0 %v452
    %v676 = vpop.f32.mrb[0].mxu0
    %v677 = vadd.f32 0.0, %v676
    %v678 = vpop.f32.mrb[0].mxu0
    %v679 = vpop.f32.mrb[0].mxu0
    %v680 = vadd.f32 0.0, %v679
    %v681 = vpop.f32.mrb[0].mxu0
    %682 = vdwg.mxu0
    %v683 = vsel %vm189, 1, 0
    %v684 = vsel %vm190, 1, 0
    %v685 = vsel %vm191, 1, 0
    %v686 = vsel %vm192, 1, 0
    %687 = vset.pattern.permute.xlu0 0
    %688 = vperm.xlu0 %687, %v683
    %v689 = vpop.permute.xlu0 %688
    %690 = vset.pattern.permute.xlu0 0
    %691 = vperm.xlu0 %690, %v684
    %v692 = vpop.permute.xlu0 %691
    %693 = vset.pattern.permute.xlu0 0
    %694 = vperm.xlu0 %693, %v685
    %v695 = vpop.permute.xlu0 %694
    %696 = vset.pattern.permute.xlu0 0
    %697 = vperm.xlu0 %696, %v686
    %v698 = vpop.permute.xlu0 %697
    %vm699 = vcmp.eq.s32.totalorder %v689, 1
    %vm700 = vcmp.eq.s32.totalorder %v692, 1
    %vm701 = vcmp.eq.s32.totalorder %v695, 1
    %vm702 = vcmp.eq.s32.totalorder %v698, 1
    %v703 = vsel %vm699, %v616, %v169
    %v704 = vsel %vm699, %v618, %v170
    %v705 = vsel %vm699, %v669, %v171
    %v706 = vsel %vm700, %v620, %v172
    %v707 = vsel %vm700, %v622, %v173
    %v708 = vsel %vm700, %v672, %v174
    %v709 = vsel %vm701, %v626, %v175
    %v710 = vsel %vm701, %v628, %v176
    %v711 = vsel %vm701, %v677, %v177
    %v712 = vsel %vm702, %v630, %v178
    %v713 = vsel %vm702, %v632, %v179
    %v714 = vsel %vm702, %v680, %v180
    %v716 = vlaneseq
    %v717 = vshrl.u32 %v716, 7
    %v718 = vsub.s32 0, %v717
    %v719 = vrot.slane %v168, %v718
    %v720 = vlaneseq
    %v721 = vshrl.u32 %v720, 7
    %v722 = vsub.s32 1, %v721
    %v723 = vrot.slane %v168, %v722
    %v724 = vlaneseq
    %v725 = vshrl.u32 %v724, 7
    %v726 = vsub.s32 2, %v725
    %v727 = vrot.slane %v168, %v726
    %v731 = vadd.f32 %v703, %v719
    %v732 = vadd.f32 %v704, %v723
    %v733 = vadd.f32 %v705, %v727
    %v734 = vadd.f32 %v706, %v719
    %v735 = vadd.f32 %v707, %v723
    %v736 = vadd.f32 %v708, %v727
    %v737 = vadd.f32 %v709, %v719
    %v738 = vadd.f32 %v710, %v723
    %v739 = vadd.f32 %v711, %v727
    %v740 = vadd.f32 %v712, %v719
    %v741 = vadd.f32 %v713, %v723
    %v742 = vadd.f32 %v714, %v727
    %v743 = vxor.u32 %v731, 2147483648
    %v744 = vxor.u32 %v734, 2147483648
    %v745 = vxor.u32 %v737, 2147483648
    %v746 = vxor.u32 %v740, 2147483648
    %v747 = vmul.f32 %v743, 1.442695
    %v748 = vpow.pop %v747
    %v749 = vmul.f32 %v744, 1.442695
    %v750 = vpow.pop %v749
    %v751 = vmul.f32 %v745, 1.442695
    %v752 = vpow.pop %v751
    %v753 = vmul.f32 %v746, 1.442695
    %v754 = vpow.pop %v753
    %v755 = vadd.f32 %v748, 1.0
    %v756 = vadd.f32 %v750, 1.0
    %v757 = vadd.f32 %v752, 1.0
    %v758 = vadd.f32 %v754, 1.0
    %v759 = vrcp.pop %v755
    %v760 = vmul.f32 1.0, %v759
    %v761 = vrcp.pop %v756
    %v762 = vmul.f32 1.0, %v761
    %v763 = vrcp.pop %v757
    %v764 = vmul.f32 1.0, %v763
    %v765 = vrcp.pop %v758
    %v766 = vmul.f32 1.0, %v765
    %v767 = vxor.u32 %v732, 2147483648
    %v768 = vxor.u32 %v735, 2147483648
    %v769 = vxor.u32 %v738, 2147483648
    %v770 = vxor.u32 %v741, 2147483648
    %v771 = vmul.f32 %v767, 1.442695
    %v772 = vpow.pop %v771
    %v773 = vmul.f32 %v768, 1.442695
    %v774 = vpow.pop %v773
    %v775 = vmul.f32 %v769, 1.442695
    %v776 = vpow.pop %v775
    %v777 = vmul.f32 %v770, 1.442695
    %v778 = vpow.pop %v777
    %v779 = vadd.f32 %v772, 1.0
    %v780 = vadd.f32 %v774, 1.0
    %v781 = vadd.f32 %v776, 1.0
    %v782 = vadd.f32 %v778, 1.0
    %v783 = vrcp.pop %v779
    %v784 = vmul.f32 1.0, %v783
    %v785 = vrcp.pop %v780
    %v786 = vmul.f32 1.0, %v785
    %v787 = vrcp.pop %v781
    %v788 = vmul.f32 1.0, %v787
    %v789 = vrcp.pop %v782
    %v790 = vmul.f32 1.0, %v789
    %v791 = vtanh.pop %v733
    %v792 = vtanh.pop %v736
    %v793 = vtanh.pop %v739
    %v794 = vtanh.pop %v742
    %v795 = vsel %vm699, %v437, %v197
    %v796 = vsel %vm700, %v440, %v198
    %v797 = vsel %vm701, %v445, %v199
    %v798 = vsel %vm702, %v448, %v200
    %v799 = vmul.f32 %v760, %v791
    %v800 = vmul.f32 %v762, %v792
    %v801 = vmul.f32 %v764, %v793
    %v802 = vmul.f32 %v766, %v794
    %v803 = vadd.f32 %v799, %v795
    %v804 = vadd.f32 %v800, %v796
    %v805 = vadd.f32 %v801, %v797
    %v806 = vadd.f32 %v802, %v798
    %v807 = vtanh.pop %v803
    %v808 = vtanh.pop %v804
    %v809 = vtanh.pop %v805
    %v810 = vtanh.pop %v806
    %v811 = vmul.f32 %v784, %v807
    %v812 = vmul.f32 %v786, %v808
    %v813 = vmul.f32 %v788, %v809
    %v814 = vmul.f32 %v790, %v810
    %vm815 = vcmp.eq.s32.totalorder %v181, 0
    %vm816 = vcmp.eq.s32.totalorder %v182, 0
    %vm817 = vcmp.eq.s32.totalorder %v183, 0
    %vm818 = vcmp.eq.s32.totalorder %v184, 0
    %v819 = vsel %vm815, 1, 0
    %v820 = vsel %vm816, 1, 0
    %v821 = vsel %vm817, 1, 0
    %v822 = vsel %vm818, 1, 0
    %823 = vset.pattern.permute.xlu0 0
    %824 = vperm.xlu0 %823, %v819
    %v825 = vpop.permute.xlu0 %824
    %826 = vset.pattern.permute.xlu0 0
    %827 = vperm.xlu0 %826, %v820
    %v828 = vpop.permute.xlu0 %827
    %829 = vset.pattern.permute.xlu0 0
    %830 = vperm.xlu0 %829, %v821
    %v831 = vpop.permute.xlu0 %830
    %832 = vset.pattern.permute.xlu0 0
    %833 = vperm.xlu0 %832, %v822
    %v834 = vpop.permute.xlu0 %833
    %vm835 = vcmp.eq.s32.totalorder %v825, 1
    %vm836 = vcmp.eq.s32.totalorder %v828, 1
    %vm837 = vcmp.eq.s32.totalorder %v831, 1
    %vm838 = vcmp.eq.s32.totalorder %v834, 1
    %v839 = vsel %vm835, %v811, %v193
    %v840 = vsel %vm836, %v812, %v194
    %v841 = vsel %vm837, %v813, %v195
    %v842 = vsel %vm838, %v814, %v196
    %v843 = vsel %vm835, %v803, %v197
    %v844 = vsel %vm836, %v804, %v198
    %v845 = vsel %vm837, %v805, %v199
    %v846 = vsel %vm838, %v806, %v200
    %v847 = vpack.c.bf16 %v840, %v839
    %v848 = vpack.c.bf16 %v842, %v841
    %849 = vmatprep.subr.bf16.mxu0 0
    %850 = vmatpush1.bf16.msra.mxu0 %v847
    %851 = vmatprep.subr.bf16.mxu0 0
    %852 = vmatpush1.bf16.msra.mxu0 %v848
    %853 = vmatprep.subr.bf16.mxu0 0
    %854 = vmatpush1.bf16.msra.mxu0 0
    %855 = vmatprep.subr.bf16.mxu0 0
    %856 = vmatpush1.bf16.msra.mxu0 0
    %857 = vmatprep.subr.bf16.mxu0 0
    %858 = vmatpush1.bf16.msra.mxu0 0
    %859 = vmatprep.subr.bf16.mxu0 0
    %860 = vmatpush1.bf16.msra.mxu0 0
    %861 = vmatprep.subr.bf16.mxu0 0
    %862 = vmatpush1.bf16.msra.mxu0 0
    %863 = vmatprep.subr.bf16.mxu0 0
    %864 = vmatpush1.bf16.msra.mxu0 0
    %865 = vmatprep.subr.bf16.mxu0 0
    %866 = vmatpush1.bf16.msra.mxu0 0
    %867 = vmatprep.subr.bf16.mxu0 0
    %868 = vmatpush1.bf16.msra.mxu0 0
    %869 = vmatprep.subr.bf16.mxu0 0
    %870 = vmatpush1.bf16.msra.mxu0 0
    %871 = vmatprep.subr.bf16.mxu0 0
    %872 = vmatpush1.bf16.msra.mxu0 0
    %873 = vmatprep.subr.bf16.mxu0 0
    %874 = vmatpush1.bf16.msra.mxu0 0
    %875 = vmatprep.subr.bf16.mxu0 0
    %876 = vmatpush1.bf16.msra.mxu0 0
    %877 = vmatprep.subr.bf16.mxu0 0
    %878 = vmatpush1.bf16.msra.mxu0 0
    %879 = vmatprep.subr.bf16.mxu0 0
    %880 = vmatpush1.bf16.msra.mxu0 0
    %881 = vmatprep.mubr.bf16.mxu0 0
    %882 = vmatmul.mubr.bf16.gmra.mrb[0].mxu0 %v215
    %v883 = vpop.f32.mrb[0].mxu0
    %v884 = vadd.f32 0.0, %v883
    %v885 = vpop.f32.mrb[0].mxu0
    %v886 = vpop.f32.mrb[0].mxu0
    %v887 = vadd.f32 0.0, %v886
    %v888 = vpop.f32.mrb[0].mxu0
    %889 = vmatprep.mubr.bf16.mxu0 0
    %890 = vmatmul.mubr.bf16.gmra.mrb[0].mxu0 %v218
    %v891 = vpop.f32.mrb[0].mxu0
    %v892 = vadd.f32 0.0, %v891
    %v893 = vpop.f32.mrb[0].mxu0
    %v894 = vpop.f32.mrb[0].mxu0
    %v895 = vadd.f32 0.0, %v894
    %v896 = vpop.f32.mrb[0].mxu0
    %897 = vdwg.mxu0
    %898 = vmatprep.subr.bf16.mxu0 0
    %899 = vmatpush1.bf16.msra.mxu0 %v307
    %900 = vmatprep.subr.bf16.mxu0 0
    %901 = vmatpush1.bf16.msra.mxu0 %v308
    %902 = vmatprep.subr.bf16.mxu0 0
    %903 = vmatpush1.bf16.msra.mxu0 %v309
    %904 = vmatprep.subr.bf16.mxu0 0
    %905 = vmatpush1.bf16.msra.mxu0 %v310
    %906 = vmatprep.subr.bf16.mxu0 0
    %907 = vmatpush1.bf16.msra.mxu0 %v311
    %908 = vmatprep.subr.bf16.mxu0 0
    %909 = vmatpush1.bf16.msra.mxu0 %v312
    %910 = vmatprep.subr.bf16.mxu0 0
    %911 = vmatpush1.bf16.msra.mxu0 %v313
    %912 = vmatprep.subr.bf16.mxu0 0
    %913 = vmatpush1.bf16.msra.mxu0 %v314
    %914 = vmatprep.subr.bf16.mxu0 0
    %915 = vmatpush1.bf16.msra.mxu0 0
    %916 = vmatprep.subr.bf16.mxu0 0
    %917 = vmatpush1.bf16.msra.mxu0 0
    %918 = vmatprep.subr.bf16.mxu0 0
    %919 = vmatpush1.bf16.msra.mxu0 0
    %920 = vmatprep.subr.bf16.mxu0 0
    %921 = vmatpush1.bf16.msra.mxu0 0
    %922 = vmatprep.subr.bf16.mxu0 0
    %923 = vmatpush1.bf16.msra.mxu0 0
    %924 = vmatprep.subr.bf16.mxu0 0
    %925 = vmatpush1.bf16.msra.mxu0 0
    %926 = vmatprep.subr.bf16.mxu0 0
    %927 = vmatpush1.bf16.msra.mxu0 0
    %928 = vmatprep.subr.bf16.mxu0 0
    %929 = vmatpush1.bf16.msra.mxu0 0
    %930 = vmatprep.mubr.bf16.mxu0 0
    %931 = vmatmul.mubr.bf16.gmra.mrb[0].mxu0 %v847
    %v932 = vpop.f32.mrb[0].mxu0
    %v933 = vadd.f32 %v273, %v932
    %v934 = vpop.f32.mrb[0].mxu0
    %v935 = vpop.f32.mrb[0].mxu0
    %v936 = vadd.f32 %v273, %v935
    %v937 = vpop.f32.mrb[0].mxu0
    %938 = vmatprep.mubr.bf16.mxu0 0
    %939 = vmatmul.mubr.bf16.gmra.mrb[0].mxu0 %v848
    %v940 = vpop.f32.mrb[0].mxu0
    %v941 = vadd.f32 %v273, %v940
    %v942 = vpop.f32.mrb[0].mxu0
    %v943 = vpop.f32.mrb[0].mxu0
    %v944 = vadd.f32 %v273, %v943
    %v945 = vpop.f32.mrb[0].mxu0
    %946 = vdwg.mxu0
    %v947 = vxor.u32 %v933, 2147483648
    %v948 = vxor.u32 %v936, 2147483648
    %v949 = vxor.u32 %v941, 2147483648
    %v950 = vxor.u32 %v944, 2147483648
    %v951 = vmul.f32 %v947, 1.442695
    %v952 = vpow.pop %v951
    %v953 = vmul.f32 %v948, 1.442695
    %v954 = vpow.pop %v953
    %v955 = vmul.f32 %v949, 1.442695
    %v956 = vpow.pop %v955
    %v957 = vmul.f32 %v950, 1.442695
    %v958 = vpow.pop %v957
    %v959 = vadd.f32 %v952, 1.0
    %v960 = vadd.f32 %v954, 1.0
    %v961 = vadd.f32 %v956, 1.0
    %v962 = vadd.f32 %v958, 1.0
    %v963 = vrcp.pop %v959
    %v964 = vmul.f32 1.0, %v963
    %v965 = vrcp.pop %v960
    %v966 = vmul.f32 1.0, %v965
    %v967 = vrcp.pop %v961
    %v968 = vmul.f32 1.0, %v967
    %v969 = vrcp.pop %v962
    %v970 = vmul.f32 1.0, %v969
    %v971 = vmul.f32 %v964, %v843
    %v972 = vmul.f32 %v966, %v844
    %v973 = vmul.f32 %v968, %v845
    %v974 = vmul.f32 %v970, %v846
    %v975 = vpack.c.bf16 %v972, %v971
    %v976 = vpack.c.bf16 %v974, %v973
    %977 = vmatprep.subr.bf16.mxu0 0
    %978 = vmatpush1.bf16.msra.mxu0 %v975
    %979 = vmatprep.subr.bf16.mxu0 0
    %980 = vmatpush1.bf16.msra.mxu0 %v976
    %981 = vmatprep.subr.bf16.mxu0 0
    %982 = vmatpush1.bf16.msra.mxu0 0
    %983 = vmatprep.subr.bf16.mxu0 0
    %984 = vmatpush1.bf16.msra.mxu0 0
    %985 = vmatprep.subr.bf16.mxu0 0
    %986 = vmatpush1.bf16.msra.mxu0 0
    %987 = vmatprep.subr.bf16.mxu0 0
    %988 = vmatpush1.bf16.msra.mxu0 0
    %989 = vmatprep.subr.bf16.mxu0 0
    %990 = vmatpush1.bf16.msra.mxu0 0
    %991 = vmatprep.subr.bf16.mxu0 0
    %992 = vmatpush1.bf16.msra.mxu0 0
    %993 = vmatprep.subr.bf16.mxu0 0
    %994 = vmatpush1.bf16.msra.mxu0 0
    %995 = vmatprep.subr.bf16.mxu0 0
    %996 = vmatpush1.bf16.msra.mxu0 0
    %997 = vmatprep.subr.bf16.mxu0 0
    %998 = vmatpush1.bf16.msra.mxu0 0
    %999 = vmatprep.subr.bf16.mxu0 0
    %1000 = vmatpush1.bf16.msra.mxu0 0
    %1001 = vmatprep.subr.bf16.mxu0 0
    %1002 = vmatpush1.bf16.msra.mxu0 0
    %1003 = vmatprep.subr.bf16.mxu0 0
    %1004 = vmatpush1.bf16.msra.mxu0 0
    %1005 = vmatprep.subr.bf16.mxu0 0
    %1006 = vmatpush1.bf16.msra.mxu0 0
    %1007 = vmatprep.subr.bf16.mxu0 0
    %1008 = vmatpush1.bf16.msra.mxu0 0
    %1009 = vmatprep.mubr.bf16.mxu0 0
    %1010 = vmatmul.mubr.bf16.gmra.mrb[0].mxu0 %v215
    %v1011 = vpop.f32.mrb[0].mxu0
    %v1012 = vadd.f32 0.0, %v1011
    %v1013 = vpop.f32.mrb[0].mxu0
    %v1014 = vpop.f32.mrb[0].mxu0
    %v1015 = vadd.f32 0.0, %v1014
    %v1016 = vpop.f32.mrb[0].mxu0
    %1017 = vmatprep.mubr.bf16.mxu0 0
    %1018 = vmatmul.mubr.bf16.gmra.mrb[0].mxu0 %v218
    %v1019 = vpop.f32.mrb[0].mxu0
    %v1020 = vadd.f32 0.0, %v1019
    %v1021 = vpop.f32.mrb[0].mxu0
    %v1022 = vpop.f32.mrb[0].mxu0
    %v1023 = vadd.f32 0.0, %v1022
    %v1024 = vpop.f32.mrb[0].mxu0
    %1025 = vdwg.mxu0
    %v1026 = vpack.c.bf16 %v887, %v884
    %v1027 = vpack.c.bf16 %v895, %v892
    %1028 = vmatprep.subr.bf16.mxu0 %v534
    %1029 = vmatpush1.bf16.msra.mxu0 %v533
    %1030 = vmatprep.subr.bf16.mxu0 %v537
    %1031 = vmatpush1.bf16.msra.mxu0 %v536
    %1032 = vmatprep.subr.bf16.mxu0 %v540
    %1033 = vmatpush1.bf16.msra.mxu0 %v539
    %1034 = vmatprep.subr.bf16.mxu0 %v543
    %1035 = vmatpush1.bf16.msra.mxu0 %v542
    %1036 = vmatprep.subr.bf16.mxu0 %v546
    %1037 = vmatpush1.bf16.msra.mxu0 %v545
    %1038 = vmatprep.subr.bf16.mxu0 %v549
    %1039 = vmatpush1.bf16.msra.mxu0 %v548
    %1040 = vmatprep.subr.bf16.mxu0 %v552
    %1041 = vmatpush1.bf16.msra.mxu0 %v551
    %1042 = vmatprep.subr.bf16.mxu0 %v555
    %1043 = vmatpush1.bf16.msra.mxu0 %v554
    %1044 = vmatprep.subr.bf16.mxu0 0
    %1045 = vmatpush1.bf16.msra.mxu0 0
    %1046 = vmatprep.subr.bf16.mxu0 0
    %1047 = vmatpush1.bf16.msra.mxu0 0
    %1048 = vmatprep.subr.bf16.mxu0 0
    %1049 = vmatpush1.bf16.msra.mxu0 0
    %1050 = vmatprep.subr.bf16.mxu0 0
    %1051 = vmatpush1.bf16.msra.mxu0 0
    %1052 = vmatprep.subr.bf16.mxu0 0
    %1053 = vmatpush1.bf16.msra.mxu0 0
    %1054 = vmatprep.subr.bf16.mxu0 0
    %1055 = vmatpush1.bf16.msra.mxu0 0
    %1056 = vmatprep.subr.bf16.mxu0 0
    %1057 = vmatpush1.bf16.msra.mxu0 0
    %1058 = vmatprep.subr.bf16.mxu0 0
    %1059 = vmatpush1.bf16.msra.mxu0 0
    %1060 = vmatprep.mubr.bf16.mxu0 0
    %1061 = vmatmul.mubr.bf16.gmra.mrb[0].mxu0 %v1026
    %v1062 = vpop.f32.mrb[0].mxu0
    %v1063 = vadd.f32 0.0, %v1062
    %v1064 = vpop.f32.mrb[0].mxu0
    %v1065 = vadd.f32 0.0, %v1064
    %v1066 = vpop.f32.mrb[0].mxu0
    %v1067 = vadd.f32 0.0, %v1066
    %v1068 = vpop.f32.mrb[0].mxu0
    %v1069 = vadd.f32 0.0, %v1068
    %1070 = vmatprep.mubr.bf16.mxu0 0
    %1071 = vmatmul.mubr.bf16.gmra.mrb[0].mxu0 %v1027
    %v1072 = vpop.f32.mrb[0].mxu0
    %v1073 = vadd.f32 0.0, %v1072
    %v1074 = vpop.f32.mrb[0].mxu0
    %v1075 = vadd.f32 0.0, %v1074
    %v1076 = vpop.f32.mrb[0].mxu0
    %v1077 = vadd.f32 0.0, %v1076
    %v1078 = vpop.f32.mrb[0].mxu0
    %v1079 = vadd.f32 0.0, %v1078
    %1080 = vdwg.mxu0
    %1081 = vmatprep.subr.bf16.mxu0 0
    %1082 = vmatpush1.bf16.msra.mxu0 %v535
    %1083 = vmatprep.subr.bf16.mxu0 0
    %1084 = vmatpush1.bf16.msra.mxu0 %v538
    %1085 = vmatprep.subr.bf16.mxu0 0
    %1086 = vmatpush1.bf16.msra.mxu0 %v541
    %1087 = vmatprep.subr.bf16.mxu0 0
    %1088 = vmatpush1.bf16.msra.mxu0 %v544
    %1089 = vmatprep.subr.bf16.mxu0 0
    %1090 = vmatpush1.bf16.msra.mxu0 %v547
    %1091 = vmatprep.subr.bf16.mxu0 0
    %1092 = vmatpush1.bf16.msra.mxu0 %v550
    %1093 = vmatprep.subr.bf16.mxu0 0
    %1094 = vmatpush1.bf16.msra.mxu0 %v553
    %1095 = vmatprep.subr.bf16.mxu0 0
    %1096 = vmatpush1.bf16.msra.mxu0 %v556
    %1097 = vmatprep.subr.bf16.mxu0 0
    %1098 = vmatpush1.bf16.msra.mxu0 0
    %1099 = vmatprep.subr.bf16.mxu0 0
    %1100 = vmatpush1.bf16.msra.mxu0 0
    %1101 = vmatprep.subr.bf16.mxu0 0
    %1102 = vmatpush1.bf16.msra.mxu0 0
    %1103 = vmatprep.subr.bf16.mxu0 0
    %1104 = vmatpush1.bf16.msra.mxu0 0
    %1105 = vmatprep.subr.bf16.mxu0 0
    %1106 = vmatpush1.bf16.msra.mxu0 0
    %1107 = vmatprep.subr.bf16.mxu0 0
    %1108 = vmatpush1.bf16.msra.mxu0 0
    %1109 = vmatprep.subr.bf16.mxu0 0
    %1110 = vmatpush1.bf16.msra.mxu0 0
    %1111 = vmatprep.subr.bf16.mxu0 0
    %1112 = vmatpush1.bf16.msra.mxu0 0
    %1113 = vmatprep.mubr.bf16.mxu0 0
    %1114 = vmatmul.mubr.bf16.gmra.mrb[0].mxu0 %v1026
    %v1115 = vpop.f32.mrb[0].mxu0
    %v1116 = vadd.f32 0.0, %v1115
    %v1117 = vpop.f32.mrb[0].mxu0
    %v1118 = vpop.f32.mrb[0].mxu0
    %v1119 = vadd.f32 0.0, %v1118
    %v1120 = vpop.f32.mrb[0].mxu0
    %1121 = vmatprep.mubr.bf16.mxu0 0
    %1122 = vmatmul.mubr.bf16.gmra.mrb[0].mxu0 %v1027
    %v1123 = vpop.f32.mrb[0].mxu0
    %v1124 = vadd.f32 0.0, %v1123
    %v1125 = vpop.f32.mrb[0].mxu0
    %v1126 = vpop.f32.mrb[0].mxu0
    %v1127 = vadd.f32 0.0, %v1126
    %v1128 = vpop.f32.mrb[0].mxu0
    %1129 = vdwg.mxu0
    %v1130 = vsel %vm699, %v1063, %v169
    %v1131 = vsel %vm699, %v1065, %v170
    %v1132 = vsel %vm699, %v1116, %v171
    %v1133 = vsel %vm700, %v1067, %v172
    %v1134 = vsel %vm700, %v1069, %v173
    %v1135 = vsel %vm700, %v1119, %v174
    %v1136 = vsel %vm701, %v1073, %v175
    %v1137 = vsel %vm701, %v1075, %v176
    %v1138 = vsel %vm701, %v1124, %v177
    %v1139 = vsel %vm702, %v1077, %v178
    %v1140 = vsel %vm702, %v1079, %v179
    %v1141 = vsel %vm702, %v1127, %v180
    %v1142 = vadd.f32 %v1130, %v719
    %v1143 = vadd.f32 %v1131, %v723
    %v1144 = vadd.f32 %v1132, %v727
    %v1145 = vadd.f32 %v1133, %v719
    %v1146 = vadd.f32 %v1134, %v723
    %v1147 = vadd.f32 %v1135, %v727
    %v1148 = vadd.f32 %v1136, %v719
    %v1149 = vadd.f32 %v1137, %v723
    %v1150 = vadd.f32 %v1138, %v727
    %v1151 = vadd.f32 %v1139, %v719
    %v1152 = vadd.f32 %v1140, %v723
    %v1153 = vadd.f32 %v1141, %v727
    %v1154 = vxor.u32 %v1142, 2147483648
    %v1155 = vxor.u32 %v1145, 2147483648
    %v1156 = vxor.u32 %v1148, 2147483648
    %v1157 = vxor.u32 %v1151, 2147483648
    %v1158 = vmul.f32 %v1154, 1.442695
    %v1159 = vpow.pop %v1158
    %v1160 = vmul.f32 %v1155, 1.442695
    %v1161 = vpow.pop %v1160
    %v1162 = vmul.f32 %v1156, 1.442695
    %v1163 = vpow.pop %v1162
    %v1164 = vmul.f32 %v1157, 1.442695
    %v1165 = vpow.pop %v1164
    %v1166 = vadd.f32 %v1159, 1.0
    %v1167 = vadd.f32 %v1161, 1.0
    %v1168 = vadd.f32 %v1163, 1.0
    %v1169 = vadd.f32 %v1165, 1.0
    %v1170 = vrcp.pop %v1166
    %v1171 = vmul.f32 1.0, %v1170
    %v1172 = vrcp.pop %v1167
    %v1173 = vmul.f32 1.0, %v1172
    %v1174 = vrcp.pop %v1168
    %v1175 = vmul.f32 1.0, %v1174
    %v1176 = vrcp.pop %v1169
    %v1177 = vmul.f32 1.0, %v1176
    %v1178 = vxor.u32 %v1143, 2147483648
    %v1179 = vxor.u32 %v1146, 2147483648
    %v1180 = vxor.u32 %v1149, 2147483648
    %v1181 = vxor.u32 %v1152, 2147483648
    %v1182 = vmul.f32 %v1178, 1.442695
    %v1183 = vpow.pop %v1182
    %v1184 = vmul.f32 %v1179, 1.442695
    %v1185 = vpow.pop %v1184
    %v1186 = vmul.f32 %v1180, 1.442695
    %v1187 = vpow.pop %v1186
    %v1188 = vmul.f32 %v1181, 1.442695
    %v1189 = vpow.pop %v1188
    %v1190 = vadd.f32 %v1183, 1.0
    %v1191 = vadd.f32 %v1185, 1.0
    %v1192 = vadd.f32 %v1187, 1.0
    %v1193 = vadd.f32 %v1189, 1.0
    %v1194 = vrcp.pop %v1190
    %v1195 = vmul.f32 1.0, %v1194
    %v1196 = vrcp.pop %v1191
    %v1197 = vmul.f32 1.0, %v1196
    %v1198 = vrcp.pop %v1192
    %v1199 = vmul.f32 1.0, %v1198
    %v1200 = vrcp.pop %v1193
    %v1201 = vmul.f32 1.0, %v1200
    %v1202 = vtanh.pop %v1144
    %v1203 = vtanh.pop %v1147
    %v1204 = vtanh.pop %v1150
    %v1205 = vtanh.pop %v1153
    %v1206 = vsel %vm699, %v1012, %v843
    %v1207 = vsel %vm700, %v1015, %v844
    %v1208 = vsel %vm701, %v1020, %v845
    %v1209 = vsel %vm702, %v1023, %v846
    %v1210 = vmul.f32 %v1171, %v1202
    %v1211 = vmul.f32 %v1173, %v1203
    %v1212 = vmul.f32 %v1175, %v1204
    %v1213 = vmul.f32 %v1177, %v1205
    %v1214 = vadd.f32 %v1210, %v1206
    %v1215 = vadd.f32 %v1211, %v1207
    %v1216 = vadd.f32 %v1212, %v1208
    %v1217 = vadd.f32 %v1213, %v1209
    %v1218 = vtanh.pop %v1214
    %v1219 = vtanh.pop %v1215
    %v1220 = vtanh.pop %v1216
    %v1221 = vtanh.pop %v1217
    %v1222 = vmul.f32 %v1195, %v1218
    %v1223 = vmul.f32 %v1197, %v1219
    %v1224 = vmul.f32 %v1199, %v1220
    %v1225 = vmul.f32 %v1201, %v1221
    %vm1226 = vcmp.eq.s32.totalorder %v181, 1
    %vm1227 = vcmp.eq.s32.totalorder %v182, 1
    %vm1228 = vcmp.eq.s32.totalorder %v183, 1
    %vm1229 = vcmp.eq.s32.totalorder %v184, 1
    %v1230 = vsel %vm1226, 1, 0
    %v1231 = vsel %vm1227, 1, 0
    %v1232 = vsel %vm1228, 1, 0
    %v1233 = vsel %vm1229, 1, 0
    %1234 = vset.pattern.permute.xlu0 0
    %1235 = vperm.xlu0 %1234, %v1230
    %v1236 = vpop.permute.xlu0 %1235
    %1237 = vset.pattern.permute.xlu0 0
    %1238 = vperm.xlu0 %1237, %v1231
    %v1239 = vpop.permute.xlu0 %1238
    %1240 = vset.pattern.permute.xlu0 0
    %1241 = vperm.xlu0 %1240, %v1232
    %v1242 = vpop.permute.xlu0 %1241
    %1243 = vset.pattern.permute.xlu0 0
    %1244 = vperm.xlu0 %1243, %v1233
    %v1245 = vpop.permute.xlu0 %1244
    %vm1246 = vcmp.eq.s32.totalorder %v1236, 1
    %vm1247 = vcmp.eq.s32.totalorder %v1239, 1
    %vm1248 = vcmp.eq.s32.totalorder %v1242, 1
    %vm1249 = vcmp.eq.s32.totalorder %v1245, 1
    %v1250 = vsel %vm1246, %v1222, %v839
    %v1251 = vsel %vm1247, %v1223, %v840
    %v1252 = vsel %vm1248, %v1224, %v841
    %v1253 = vsel %vm1249, %v1225, %v842
    %v1254 = vsel %vm1246, %v1214, %v843
    %v1255 = vsel %vm1247, %v1215, %v844
    %v1256 = vsel %vm1248, %v1216, %v845
    %v1257 = vsel %vm1249, %v1217, %v846
    %v1258 = vpack.c.bf16 %v1251, %v1250
    %v1259 = vpack.c.bf16 %v1253, %v1252
    %1260 = vmatprep.subr.bf16.mxu0 0
    %1261 = vmatpush1.bf16.msra.mxu0 %v1258
    %1262 = vmatprep.subr.bf16.mxu0 0
    %1263 = vmatpush1.bf16.msra.mxu0 %v1259
    %1264 = vmatprep.subr.bf16.mxu0 0
    %1265 = vmatpush1.bf16.msra.mxu0 0
    %1266 = vmatprep.subr.bf16.mxu0 0
    %1267 = vmatpush1.bf16.msra.mxu0 0
    %1268 = vmatprep.subr.bf16.mxu0 0
    %1269 = vmatpush1.bf16.msra.mxu0 0
    %1270 = vmatprep.subr.bf16.mxu0 0
    %1271 = vmatpush1.bf16.msra.mxu0 0
    %1272 = vmatprep.subr.bf16.mxu0 0
    %1273 = vmatpush1.bf16.msra.mxu0 0
    %1274 = vmatprep.subr.bf16.mxu0 0
    %1275 = vmatpush1.bf16.msra.mxu0 0
    %1276 = vmatprep.subr.bf16.mxu0 0
    %1277 = vmatpush1.bf16.msra.mxu0 0
    %1278 = vmatprep.subr.bf16.mxu0 0
    %1279 = vmatpush1.bf16.msra.mxu0 0
    %1280 = vmatprep.subr.bf16.mxu0 0
    %1281 = vmatpush1.bf16.msra.mxu0 0
    %1282 = vmatprep.subr.bf16.mxu0 0
    %1283 = vmatpush1.bf16.msra.mxu0 0
    %1284 = vmatprep.subr.bf16.mxu0 0
    %1285 = vmatpush1.bf16.msra.mxu0 0
    %1286 = vmatprep.subr.bf16.mxu0 0
    %1287 = vmatpush1.bf16.msra.mxu0 0
    %1288 = vmatprep.subr.bf16.mxu0 0
    %1289 = vmatpush1.bf16.msra.mxu0 0
    %1290 = vmatprep.subr.bf16.mxu0 0
    %1291 = vmatpush1.bf16.msra.mxu0 0
    %1292 = vmatprep.mubr.bf16.mxu0 0
    %1293 = vmatmul.mubr.bf16.gmra.mrb[0].mxu0 %v215
    %v1294 = vpop.f32.mrb[0].mxu0
    %v1295 = vadd.f32 0.0, %v1294
    %v1296 = vpop.f32.mrb[0].mxu0
    %v1297 = vpop.f32.mrb[0].mxu0
    %v1298 = vadd.f32 0.0, %v1297
    %v1299 = vpop.f32.mrb[0].mxu0
    %1300 = vmatprep.mubr.bf16.mxu0 0
    %1301 = vmatmul.mubr.bf16.gmra.mrb[0].mxu0 %v218
    %v1302 = vpop.f32.mrb[0].mxu0
    %v1303 = vadd.f32 0.0, %v1302
    %v1304 = vpop.f32.mrb[0].mxu0
    %v1305 = vpop.f32.mrb[0].mxu0
    %v1306 = vadd.f32 0.0, %v1305
    %v1307 = vpop.f32.mrb[0].mxu0
    %1308 = vdwg.mxu0
    %1309 = vmatprep.subr.bf16.mxu0 0
    %1310 = vmatpush1.bf16.msra.mxu0 %v307
    %1311 = vmatprep.subr.bf16.mxu0 0
    %1312 = vmatpush1.bf16.msra.mxu0 %v308
    %1313 = vmatprep.subr.bf16.mxu0 0
    %1314 = vmatpush1.bf16.msra.mxu0 %v309
    %1315 = vmatprep.subr.bf16.mxu0 0
    %1316 = vmatpush1.bf16.msra.mxu0 %v310
    %1317 = vmatprep.subr.bf16.mxu0 0
    %1318 = vmatpush1.bf16.msra.mxu0 %v311
    %1319 = vmatprep.subr.bf16.mxu0 0
    %1320 = vmatpush1.bf16.msra.mxu0 %v312
    %1321 = vmatprep.subr.bf16.mxu0 0
    %1322 = vmatpush1.bf16.msra.mxu0 %v313
    %1323 = vmatprep.subr.bf16.mxu0 0
    %1324 = vmatpush1.bf16.msra.mxu0 %v314
    %1325 = vmatprep.subr.bf16.mxu0 0
    %1326 = vmatpush1.bf16.msra.mxu0 0
    %1327 = vmatprep.subr.bf16.mxu0 0
    %1328 = vmatpush1.bf16.msra.mxu0 0
    %1329 = vmatprep.subr.bf16.mxu0 0
    %1330 = vmatpush1.bf16.msra.mxu0 0
    %1331 = vmatprep.subr.bf16.mxu0 0
    %1332 = vmatpush1.bf16.msra.mxu0 0
    %1333 = vmatprep.subr.bf16.mxu0 0
    %1334 = vmatpush1.bf16.msra.mxu0 0
    %1335 = vmatprep.subr.bf16.mxu0 0
    %1336 = vmatpush1.bf16.msra.mxu0 0
    %1337 = vmatprep.subr.bf16.mxu0 0
    %1338 = vmatpush1.bf16.msra.mxu0 0
    %1339 = vmatprep.subr.bf16.mxu0 0
    %1340 = vmatpush1.bf16.msra.mxu0 0
    %1341 = vmatprep.mubr.bf16.mxu0 0
    %1342 = vmatmul.mubr.bf16.gmra.mrb[0].mxu0 %v1258
    %v1343 = vpop.f32.mrb[0].mxu0
    %v1344 = vadd.f32 %v273, %v1343
    %v1345 = vpop.f32.mrb[0].mxu0
    %v1346 = vpop.f32.mrb[0].mxu0
    %v1347 = vadd.f32 %v273, %v1346
    %v1348 = vpop.f32.mrb[0].mxu0
    %1349 = vmatprep.mubr.bf16.mxu0 0
    %1350 = vmatmul.mubr.bf16.gmra.mrb[0].mxu0 %v1259
    %v1351 = vpop.f32.mrb[0].mxu0
    %v1352 = vadd.f32 %v273, %v1351
    %v1353 = vpop.f32.mrb[0].mxu0
    %v1354 = vpop.f32.mrb[0].mxu0
    %v1355 = vadd.f32 %v273, %v1354
    %v1356 = vpop.f32.mrb[0].mxu0
    %1357 = vdwg.mxu0
    %v1358 = vxor.u32 %v1344, 2147483648
    %v1359 = vxor.u32 %v1347, 2147483648
    %v1360 = vxor.u32 %v1352, 2147483648
    %v1361 = vxor.u32 %v1355, 2147483648
    %v1362 = vmul.f32 %v1358, 1.442695
    %v1363 = vpow.pop %v1362
    %v1364 = vmul.f32 %v1359, 1.442695
    %v1365 = vpow.pop %v1364
    %v1366 = vmul.f32 %v1360, 1.442695
    %v1367 = vpow.pop %v1366
    %v1368 = vmul.f32 %v1361, 1.442695
    %v1369 = vpow.pop %v1368
    %v1370 = vadd.f32 %v1363, 1.0
    %v1371 = vadd.f32 %v1365, 1.0
    %v1372 = vadd.f32 %v1367, 1.0
    %v1373 = vadd.f32 %v1369, 1.0
    %v1374 = vrcp.pop %v1370
    %v1375 = vmul.f32 1.0, %v1374
    %v1376 = vrcp.pop %v1371
    %v1377 = vmul.f32 1.0, %v1376
    %v1378 = vrcp.pop %v1372
    %v1379 = vmul.f32 1.0, %v1378
    %v1380 = vrcp.pop %v1373
    %v1381 = vmul.f32 1.0, %v1380
    %v1382 = vmul.f32 %v1375, %v1254
    %v1383 = vmul.f32 %v1377, %v1255
    %v1384 = vmul.f32 %v1379, %v1256
    %v1385 = vmul.f32 %v1381, %v1257
    %v1386 = vpack.c.bf16 %v1383, %v1382
    %v1387 = vpack.c.bf16 %v1385, %v1384
    %1388 = vmatprep.subr.bf16.mxu0 0
    %1389 = vmatpush1.bf16.msra.mxu0 %v1386
    %1390 = vmatprep.subr.bf16.mxu0 0
    %1391 = vmatpush1.bf16.msra.mxu0 %v1387
    %1392 = vmatprep.subr.bf16.mxu0 0
    %1393 = vmatpush1.bf16.msra.mxu0 0
    %1394 = vmatprep.subr.bf16.mxu0 0
    %1395 = vmatpush1.bf16.msra.mxu0 0
    %1396 = vmatprep.subr.bf16.mxu0 0
    %1397 = vmatpush1.bf16.msra.mxu0 0
    %1398 = vmatprep.subr.bf16.mxu0 0
    %1399 = vmatpush1.bf16.msra.mxu0 0
    %1400 = vmatprep.subr.bf16.mxu0 0
    %1401 = vmatpush1.bf16.msra.mxu0 0
    %1402 = vmatprep.subr.bf16.mxu0 0
    %1403 = vmatpush1.bf16.msra.mxu0 0
    %1404 = vmatprep.subr.bf16.mxu0 0
    %1405 = vmatpush1.bf16.msra.mxu0 0
    %1406 = vmatprep.subr.bf16.mxu0 0
    %1407 = vmatpush1.bf16.msra.mxu0 0
    %1408 = vmatprep.subr.bf16.mxu0 0
    %1409 = vmatpush1.bf16.msra.mxu0 0
    %1410 = vmatprep.subr.bf16.mxu0 0
    %1411 = vmatpush1.bf16.msra.mxu0 0
    %1412 = vmatprep.subr.bf16.mxu0 0
    %1413 = vmatpush1.bf16.msra.mxu0 0
    %1414 = vmatprep.subr.bf16.mxu0 0
    %1415 = vmatpush1.bf16.msra.mxu0 0
    %1416 = vmatprep.subr.bf16.mxu0 0
    %1417 = vmatpush1.bf16.msra.mxu0 0
    %1418 = vmatprep.subr.bf16.mxu0 0
    %1419 = vmatpush1.bf16.msra.mxu0 0
    %1420 = vmatprep.mubr.bf16.mxu0 0
    %1421 = vmatmul.mubr.bf16.gmra.mrb[0].mxu0 %v215
    %v1422 = vpop.f32.mrb[0].mxu0
    %v1423 = vadd.f32 0.0, %v1422
    %v1424 = vpop.f32.mrb[0].mxu0
    %v1425 = vpop.f32.mrb[0].mxu0
    %v1426 = vadd.f32 0.0, %v1425
    %v1427 = vpop.f32.mrb[0].mxu0
    %1428 = vmatprep.mubr.bf16.mxu0 0
    %1429 = vmatmul.mubr.bf16.gmra.mrb[0].mxu0 %v218
    %v1430 = vpop.f32.mrb[0].mxu0
    %v1431 = vadd.f32 0.0, %v1430
    %v1432 = vpop.f32.mrb[0].mxu0
    %v1433 = vpop.f32.mrb[0].mxu0
    %v1434 = vadd.f32 0.0, %v1433
    %v1435 = vpop.f32.mrb[0].mxu0
    %1436 = vdwg.mxu0
    %v1437 = vpack.c.bf16 %v1298, %v1295
    %v1438 = vpack.c.bf16 %v1306, %v1303
    %1439 = vmatprep.subr.bf16.mxu0 %v534
    %1440 = vmatpush1.bf16.msra.mxu0 %v533
    %1441 = vmatprep.subr.bf16.mxu0 %v537
    %1442 = vmatpush1.bf16.msra.mxu0 %v536
    %1443 = vmatprep.subr.bf16.mxu0 %v540
    %1444 = vmatpush1.bf16.msra.mxu0 %v539
    %1445 = vmatprep.subr.bf16.mxu0 %v543
    %1446 = vmatpush1.bf16.msra.mxu0 %v542
    %1447 = vmatprep.subr.bf16.mxu0 %v546
    %1448 = vmatpush1.bf16.msra.mxu0 %v545
    %1449 = vmatprep.subr.bf16.mxu0 %v549
    %1450 = vmatpush1.bf16.msra.mxu0 %v548
    %1451 = vmatprep.subr.bf16.mxu0 %v552
    %1452 = vmatpush1.bf16.msra.mxu0 %v551
    %1453 = vmatprep.subr.bf16.mxu0 %v555
    %1454 = vmatpush1.bf16.msra.mxu0 %v554
    %1455 = vmatprep.subr.bf16.mxu0 0
    %1456 = vmatpush1.bf16.msra.mxu0 0
    %1457 = vmatprep.subr.bf16.mxu0 0
    %1458 = vmatpush1.bf16.msra.mxu0 0
    %1459 = vmatprep.subr.bf16.mxu0 0
    %1460 = vmatpush1.bf16.msra.mxu0 0
    %1461 = vmatprep.subr.bf16.mxu0 0
    %1462 = vmatpush1.bf16.msra.mxu0 0
    %1463 = vmatprep.subr.bf16.mxu0 0
    %1464 = vmatpush1.bf16.msra.mxu0 0
    %1465 = vmatprep.subr.bf16.mxu0 0
    %1466 = vmatpush1.bf16.msra.mxu0 0
    %1467 = vmatprep.subr.bf16.mxu0 0
    %1468 = vmatpush1.bf16.msra.mxu0 0
    %1469 = vmatprep.subr.bf16.mxu0 0
    %1470 = vmatpush1.bf16.msra.mxu0 0
    %1471 = vmatprep.mubr.bf16.mxu0 0
    %1472 = vmatmul.mubr.bf16.gmra.mrb[0].mxu0 %v1437
    %v1473 = vpop.f32.mrb[0].mxu0
    %v1474 = vadd.f32 0.0, %v1473
    %v1475 = vpop.f32.mrb[0].mxu0
    %v1476 = vadd.f32 0.0, %v1475
    %v1477 = vpop.f32.mrb[0].mxu0
    %v1478 = vadd.f32 0.0, %v1477
    %v1479 = vpop.f32.mrb[0].mxu0
    %v1480 = vadd.f32 0.0, %v1479
    %1481 = vmatprep.mubr.bf16.mxu0 0
    %1482 = vmatmul.mubr.bf16.gmra.mrb[0].mxu0 %v1438
    %v1483 = vpop.f32.mrb[0].mxu0
    %v1484 = vadd.f32 0.0, %v1483
    %v1485 = vpop.f32.mrb[0].mxu0
    %v1486 = vadd.f32 0.0, %v1485
    %v1487 = vpop.f32.mrb[0].mxu0
    %v1488 = vadd.f32 0.0, %v1487
    %v1489 = vpop.f32.mrb[0].mxu0
    %v1490 = vadd.f32 0.0, %v1489
    %1491 = vdwg.mxu0
    %1492 = vmatprep.subr.bf16.mxu0 0
    %1493 = vmatpush1.bf16.msra.mxu0 %v535
    %1494 = vmatprep.subr.bf16.mxu0 0
    %1495 = vmatpush1.bf16.msra.mxu0 %v538
    %1496 = vmatprep.subr.bf16.mxu0 0
    %1497 = vmatpush1.bf16.msra.mxu0 %v541
    %1498 = vmatprep.subr.bf16.mxu0 0
    %1499 = vmatpush1.bf16.msra.mxu0 %v544
    %1500 = vmatprep.subr.bf16.mxu0 0
    %1501 = vmatpush1.bf16.msra.mxu0 %v547
    %1502 = vmatprep.subr.bf16.mxu0 0
    %1503 = vmatpush1.bf16.msra.mxu0 %v550
    %1504 = vmatprep.subr.bf16.mxu0 0
    %1505 = vmatpush1.bf16.msra.mxu0 %v553
    %1506 = vmatprep.subr.bf16.mxu0 0
    %1507 = vmatpush1.bf16.msra.mxu0 %v556
    %1508 = vmatprep.subr.bf16.mxu0 0
    %1509 = vmatpush1.bf16.msra.mxu0 0
    %1510 = vmatprep.subr.bf16.mxu0 0
    %1511 = vmatpush1.bf16.msra.mxu0 0
    %1512 = vmatprep.subr.bf16.mxu0 0
    %1513 = vmatpush1.bf16.msra.mxu0 0
    %1514 = vmatprep.subr.bf16.mxu0 0
    %1515 = vmatpush1.bf16.msra.mxu0 0
    %1516 = vmatprep.subr.bf16.mxu0 0
    %1517 = vmatpush1.bf16.msra.mxu0 0
    %1518 = vmatprep.subr.bf16.mxu0 0
    %1519 = vmatpush1.bf16.msra.mxu0 0
    %1520 = vmatprep.subr.bf16.mxu0 0
    %1521 = vmatpush1.bf16.msra.mxu0 0
    %1522 = vmatprep.subr.bf16.mxu0 0
    %1523 = vmatpush1.bf16.msra.mxu0 0
    %1524 = vmatprep.mubr.bf16.mxu0 0
    %1525 = vmatmul.mubr.bf16.gmra.mrb[0].mxu0 %v1437
    %v1526 = vpop.f32.mrb[0].mxu0
    %v1527 = vadd.f32 0.0, %v1526
    %v1528 = vpop.f32.mrb[0].mxu0
    %v1529 = vpop.f32.mrb[0].mxu0
    %v1530 = vadd.f32 0.0, %v1529
    %v1531 = vpop.f32.mrb[0].mxu0
    %1532 = vmatprep.mubr.bf16.mxu0 0
    %1533 = vmatmul.mubr.bf16.gmra.mrb[0].mxu0 %v1438
    %v1534 = vpop.f32.mrb[0].mxu0
    %v1535 = vadd.f32 0.0, %v1534
    %v1536 = vpop.f32.mrb[0].mxu0
    %v1537 = vpop.f32.mrb[0].mxu0
    %v1538 = vadd.f32 0.0, %v1537
    %v1539 = vpop.f32.mrb[0].mxu0
    %1540 = vdwg.mxu0
    %v1541 = vsel %vm699, %v1474, %v169
    %v1542 = vsel %vm699, %v1476, %v170
    %v1543 = vsel %vm699, %v1527, %v171
    %v1544 = vsel %vm700, %v1478, %v172
    %v1545 = vsel %vm700, %v1480, %v173
    %v1546 = vsel %vm700, %v1530, %v174
    %v1547 = vsel %vm701, %v1484, %v175
    %v1548 = vsel %vm701, %v1486, %v176
    %v1549 = vsel %vm701, %v1535, %v177
    %v1550 = vsel %vm702, %v1488, %v178
    %v1551 = vsel %vm702, %v1490, %v179
    %v1552 = vsel %vm702, %v1538, %v180
    %v1553 = vadd.f32 %v1541, %v719
    %v1554 = vadd.f32 %v1542, %v723
    %v1555 = vadd.f32 %v1543, %v727
    %v1556 = vadd.f32 %v1544, %v719
    %v1557 = vadd.f32 %v1545, %v723
    %v1558 = vadd.f32 %v1546, %v727
    %v1559 = vadd.f32 %v1547, %v719
    %v1560 = vadd.f32 %v1548, %v723
    %v1561 = vadd.f32 %v1549, %v727
    %v1562 = vadd.f32 %v1550, %v719
    %v1563 = vadd.f32 %v1551, %v723
    %v1564 = vadd.f32 %v1552, %v727
    %v1565 = vxor.u32 %v1553, 2147483648
    %v1566 = vxor.u32 %v1556, 2147483648
    %v1567 = vxor.u32 %v1559, 2147483648
    %v1568 = vxor.u32 %v1562, 2147483648
    %v1569 = vmul.f32 %v1565, 1.442695
    %v1570 = vpow.pop %v1569
    %v1571 = vmul.f32 %v1566, 1.442695
    %v1572 = vpow.pop %v1571
    %v1573 = vmul.f32 %v1567, 1.442695
    %v1574 = vpow.pop %v1573
    %v1575 = vmul.f32 %v1568, 1.442695
    %v1576 = vpow.pop %v1575
    %v1577 = vadd.f32 %v1570, 1.0
    %v1578 = vadd.f32 %v1572, 1.0
    %v1579 = vadd.f32 %v1574, 1.0
    %v1580 = vadd.f32 %v1576, 1.0
    %v1581 = vrcp.pop %v1577
    %v1582 = vmul.f32 1.0, %v1581
    %v1583 = vrcp.pop %v1578
    %v1584 = vmul.f32 1.0, %v1583
    %v1585 = vrcp.pop %v1579
    %v1586 = vmul.f32 1.0, %v1585
    %v1587 = vrcp.pop %v1580
    %v1588 = vmul.f32 1.0, %v1587
    %v1589 = vxor.u32 %v1554, 2147483648
    %v1590 = vxor.u32 %v1557, 2147483648
    %v1591 = vxor.u32 %v1560, 2147483648
    %v1592 = vxor.u32 %v1563, 2147483648
    %v1593 = vmul.f32 %v1589, 1.442695
    %v1594 = vpow.pop %v1593
    %v1595 = vmul.f32 %v1590, 1.442695
    %v1596 = vpow.pop %v1595
    %v1597 = vmul.f32 %v1591, 1.442695
    %v1598 = vpow.pop %v1597
    %v1599 = vmul.f32 %v1592, 1.442695
    %v1600 = vpow.pop %v1599
    %v1601 = vadd.f32 %v1594, 1.0
    %v1602 = vadd.f32 %v1596, 1.0
    %v1603 = vadd.f32 %v1598, 1.0
    %v1604 = vadd.f32 %v1600, 1.0
    %v1605 = vrcp.pop %v1601
    %v1606 = vmul.f32 1.0, %v1605
    %v1607 = vrcp.pop %v1602
    %v1608 = vmul.f32 1.0, %v1607
    %v1609 = vrcp.pop %v1603
    %v1610 = vmul.f32 1.0, %v1609
    %v1611 = vrcp.pop %v1604
    %v1612 = vmul.f32 1.0, %v1611
    %v1613 = vtanh.pop %v1555
    %v1614 = vtanh.pop %v1558
    %v1615 = vtanh.pop %v1561
    %v1616 = vtanh.pop %v1564
    %v1617 = vsel %vm699, %v1423, %v1254
    %v1618 = vsel %vm700, %v1426, %v1255
    %v1619 = vsel %vm701, %v1431, %v1256
    %v1620 = vsel %vm702, %v1434, %v1257
    %v1621 = vmul.f32 %v1582, %v1613
    %v1622 = vmul.f32 %v1584, %v1614
    %v1623 = vmul.f32 %v1586, %v1615
    %v1624 = vmul.f32 %v1588, %v1616
    %v1625 = vadd.f32 %v1621, %v1617
    %v1626 = vadd.f32 %v1622, %v1618
    %v1627 = vadd.f32 %v1623, %v1619
    %v1628 = vadd.f32 %v1624, %v1620
    %v1629 = vtanh.pop %v1625
    %v1630 = vtanh.pop %v1626
    %v1631 = vtanh.pop %v1627
    %v1632 = vtanh.pop %v1628
    %v1633 = vmul.f32 %v1606, %v1629
    %v1634 = vmul.f32 %v1608, %v1630
    %v1635 = vmul.f32 %v1610, %v1631
    %v1636 = vmul.f32 %v1612, %v1632
    %vm1637 = vcmp.eq.s32.totalorder %v181, 2
    %vm1638 = vcmp.eq.s32.totalorder %v182, 2
    %vm1639 = vcmp.eq.s32.totalorder %v183, 2
    %vm1640 = vcmp.eq.s32.totalorder %v184, 2
    %v1641 = vsel %vm1637, 1, 0
    %v1642 = vsel %vm1638, 1, 0
    %v1643 = vsel %vm1639, 1, 0
    %v1644 = vsel %vm1640, 1, 0
    %1645 = vset.pattern.permute.xlu0 0
    %1646 = vperm.xlu0 %1645, %v1641
    %v1647 = vpop.permute.xlu0 %1646
    %1648 = vset.pattern.permute.xlu0 0
    %1649 = vperm.xlu0 %1648, %v1642
    %v1650 = vpop.permute.xlu0 %1649
    %1651 = vset.pattern.permute.xlu0 0
    %1652 = vperm.xlu0 %1651, %v1643
    %v1653 = vpop.permute.xlu0 %1652
    %1654 = vset.pattern.permute.xlu0 0
    %1655 = vperm.xlu0 %1654, %v1644
    %v1656 = vpop.permute.xlu0 %1655
    %vm1657 = vcmp.eq.s32.totalorder %v1647, 1
    %vm1658 = vcmp.eq.s32.totalorder %v1650, 1
    %vm1659 = vcmp.eq.s32.totalorder %v1653, 1
    %vm1660 = vcmp.eq.s32.totalorder %v1656, 1
    %v1661 = vsel %vm1657, %v1633, %v1250
    %v1662 = vsel %vm1658, %v1634, %v1251
    %v1663 = vsel %vm1659, %v1635, %v1252
    %v1664 = vsel %vm1660, %v1636, %v1253
    %v1665 = vsel %vm1657, %v1625, %v1254
    %v1666 = vsel %vm1658, %v1626, %v1255
    %v1667 = vsel %vm1659, %v1627, %v1256
    %v1668 = vsel %vm1660, %v1628, %v1257
    %v1669 = vpack.c.bf16 %v1662, %v1661
    %v1670 = vpack.c.bf16 %v1664, %v1663
    %1671 = vmatprep.subr.bf16.mxu0 0
    %1672 = vmatpush1.bf16.msra.mxu0 %v1669
    %1673 = vmatprep.subr.bf16.mxu0 0
    %1674 = vmatpush1.bf16.msra.mxu0 %v1670
    %1675 = vmatprep.subr.bf16.mxu0 0
    %1676 = vmatpush1.bf16.msra.mxu0 0
    %1677 = vmatprep.subr.bf16.mxu0 0
    %1678 = vmatpush1.bf16.msra.mxu0 0
    %1679 = vmatprep.subr.bf16.mxu0 0
    %1680 = vmatpush1.bf16.msra.mxu0 0
    %1681 = vmatprep.subr.bf16.mxu0 0
    %1682 = vmatpush1.bf16.msra.mxu0 0
    %1683 = vmatprep.subr.bf16.mxu0 0
    %1684 = vmatpush1.bf16.msra.mxu0 0
    %1685 = vmatprep.subr.bf16.mxu0 0
    %1686 = vmatpush1.bf16.msra.mxu0 0
    %1687 = vmatprep.subr.bf16.mxu0 0
    %1688 = vmatpush1.bf16.msra.mxu0 0
    %1689 = vmatprep.subr.bf16.mxu0 0
    %1690 = vmatpush1.bf16.msra.mxu0 0
    %1691 = vmatprep.subr.bf16.mxu0 0
    %1692 = vmatpush1.bf16.msra.mxu0 0
    %1693 = vmatprep.subr.bf16.mxu0 0
    %1694 = vmatpush1.bf16.msra.mxu0 0
    %1695 = vmatprep.subr.bf16.mxu0 0
    %1696 = vmatpush1.bf16.msra.mxu0 0
    %1697 = vmatprep.subr.bf16.mxu0 0
    %1698 = vmatpush1.bf16.msra.mxu0 0
    %1699 = vmatprep.subr.bf16.mxu0 0
    %1700 = vmatpush1.bf16.msra.mxu0 0
    %1701 = vmatprep.subr.bf16.mxu0 0
    %1702 = vmatpush1.bf16.msra.mxu0 0
    %1703 = vmatprep.mubr.bf16.mxu0 0
    %1704 = vmatmul.mubr.bf16.gmra.mrb[0].mxu0 %v215
    %v1705 = vpop.f32.mrb[0].mxu0
    %v1706 = vadd.f32 0.0, %v1705
    %v1707 = vpop.f32.mrb[0].mxu0
    %v1708 = vpop.f32.mrb[0].mxu0
    %v1709 = vadd.f32 0.0, %v1708
    %v1710 = vpop.f32.mrb[0].mxu0
    %1711 = vmatprep.mubr.bf16.mxu0 0
    %1712 = vmatmul.mubr.bf16.gmra.mrb[0].mxu0 %v218
    %v1713 = vpop.f32.mrb[0].mxu0
    %v1714 = vadd.f32 0.0, %v1713
    %v1715 = vpop.f32.mrb[0].mxu0
    %v1716 = vpop.f32.mrb[0].mxu0
    %v1717 = vadd.f32 0.0, %v1716
    %v1718 = vpop.f32.mrb[0].mxu0
    %1719 = vdwg.mxu0
    %1720 = vmatprep.subr.bf16.mxu0 0
    %1721 = vmatpush1.bf16.msra.mxu0 %v307
    %1722 = vmatprep.subr.bf16.mxu0 0
    %1723 = vmatpush1.bf16.msra.mxu0 %v308
    %1724 = vmatprep.subr.bf16.mxu0 0
    %1725 = vmatpush1.bf16.msra.mxu0 %v309
    %1726 = vmatprep.subr.bf16.mxu0 0
    %1727 = vmatpush1.bf16.msra.mxu0 %v310
    %1728 = vmatprep.subr.bf16.mxu0 0
    %1729 = vmatpush1.bf16.msra.mxu0 %v311
    %1730 = vmatprep.subr.bf16.mxu0 0
    %1731 = vmatpush1.bf16.msra.mxu0 %v312
    %1732 = vmatprep.subr.bf16.mxu0 0
    %1733 = vmatpush1.bf16.msra.mxu0 %v313
    %1734 = vmatprep.subr.bf16.mxu0 0
    %1735 = vmatpush1.bf16.msra.mxu0 %v314
    %1736 = vmatprep.subr.bf16.mxu0 0
    %1737 = vmatpush1.bf16.msra.mxu0 0
    %1738 = vmatprep.subr.bf16.mxu0 0
    %1739 = vmatpush1.bf16.msra.mxu0 0
    %1740 = vmatprep.subr.bf16.mxu0 0
    %1741 = vmatpush1.bf16.msra.mxu0 0
    %1742 = vmatprep.subr.bf16.mxu0 0
    %1743 = vmatpush1.bf16.msra.mxu0 0
    %1744 = vmatprep.subr.bf16.mxu0 0
    %1745 = vmatpush1.bf16.msra.mxu0 0
    %1746 = vmatprep.subr.bf16.mxu0 0
    %1747 = vmatpush1.bf16.msra.mxu0 0
    %1748 = vmatprep.subr.bf16.mxu0 0
    %1749 = vmatpush1.bf16.msra.mxu0 0
    %1750 = vmatprep.subr.bf16.mxu0 0
    %1751 = vmatpush1.bf16.msra.mxu0 0
    %1752 = vmatprep.mubr.bf16.mxu0 0
    %1753 = vmatmul.mubr.bf16.gmra.mrb[0].mxu0 %v1669
    %v1754 = vpop.f32.mrb[0].mxu0
    %v1755 = vadd.f32 %v273, %v1754
    %v1756 = vpop.f32.mrb[0].mxu0
    %v1757 = vpop.f32.mrb[0].mxu0
    %v1758 = vadd.f32 %v273, %v1757
    %v1759 = vpop.f32.mrb[0].mxu0
    %1760 = vmatprep.mubr.bf16.mxu0 0
    %1761 = vmatmul.mubr.bf16.gmra.mrb[0].mxu0 %v1670
    %v1762 = vpop.f32.mrb[0].mxu0
    %v1763 = vadd.f32 %v273, %v1762
    %v1764 = vpop.f32.mrb[0].mxu0
    %v1765 = vpop.f32.mrb[0].mxu0
    %v1766 = vadd.f32 %v273, %v1765
    %v1767 = vpop.f32.mrb[0].mxu0
    %1768 = vdwg.mxu0
    %v1769 = vxor.u32 %v1755, 2147483648
    %v1770 = vxor.u32 %v1758, 2147483648
    %v1771 = vxor.u32 %v1763, 2147483648
    %v1772 = vxor.u32 %v1766, 2147483648
    %v1773 = vmul.f32 %v1769, 1.442695
    %v1774 = vpow.pop %v1773
    %v1775 = vmul.f32 %v1770, 1.442695
    %v1776 = vpow.pop %v1775
    %v1777 = vmul.f32 %v1771, 1.442695
    %v1778 = vpow.pop %v1777
    %v1779 = vmul.f32 %v1772, 1.442695
    %v1780 = vpow.pop %v1779
    %v1781 = vadd.f32 %v1774, 1.0
    %v1782 = vadd.f32 %v1776, 1.0
    %v1783 = vadd.f32 %v1778, 1.0
    %v1784 = vadd.f32 %v1780, 1.0
    %v1785 = vrcp.pop %v1781
    %v1786 = vmul.f32 1.0, %v1785
    %v1787 = vrcp.pop %v1782
    %v1788 = vmul.f32 1.0, %v1787
    %v1789 = vrcp.pop %v1783
    %v1790 = vmul.f32 1.0, %v1789
    %v1791 = vrcp.pop %v1784
    %v1792 = vmul.f32 1.0, %v1791
    %v1793 = vmul.f32 %v1786, %v1665
    %v1794 = vmul.f32 %v1788, %v1666
    %v1795 = vmul.f32 %v1790, %v1667
    %v1796 = vmul.f32 %v1792, %v1668
    %v1797 = vpack.c.bf16 %v1794, %v1793
    %v1798 = vpack.c.bf16 %v1796, %v1795
    %1799 = vmatprep.subr.bf16.mxu0 0
    %1800 = vmatpush1.bf16.msra.mxu0 %v1797
    %1801 = vmatprep.subr.bf16.mxu0 0
    %1802 = vmatpush1.bf16.msra.mxu0 %v1798
    %1803 = vmatprep.subr.bf16.mxu0 0
    %1804 = vmatpush1.bf16.msra.mxu0 0
    %1805 = vmatprep.subr.bf16.mxu0 0
    %1806 = vmatpush1.bf16.msra.mxu0 0
    %1807 = vmatprep.subr.bf16.mxu0 0
    %1808 = vmatpush1.bf16.msra.mxu0 0
    %1809 = vmatprep.subr.bf16.mxu0 0
    %1810 = vmatpush1.bf16.msra.mxu0 0
    %1811 = vmatprep.subr.bf16.mxu0 0
    %1812 = vmatpush1.bf16.msra.mxu0 0
    %1813 = vmatprep.subr.bf16.mxu0 0
    %1814 = vmatpush1.bf16.msra.mxu0 0
    %1815 = vmatprep.subr.bf16.mxu0 0
    %1816 = vmatpush1.bf16.msra.mxu0 0
    %1817 = vmatprep.subr.bf16.mxu0 0
    %1818 = vmatpush1.bf16.msra.mxu0 0
    %1819 = vmatprep.subr.bf16.mxu0 0
    %1820 = vmatpush1.bf16.msra.mxu0 0
    %1821 = vmatprep.subr.bf16.mxu0 0
    %1822 = vmatpush1.bf16.msra.mxu0 0
    %1823 = vmatprep.subr.bf16.mxu0 0
    %1824 = vmatpush1.bf16.msra.mxu0 0
    %1825 = vmatprep.subr.bf16.mxu0 0
    %1826 = vmatpush1.bf16.msra.mxu0 0
    %1827 = vmatprep.subr.bf16.mxu0 0
    %1828 = vmatpush1.bf16.msra.mxu0 0
    %1829 = vmatprep.subr.bf16.mxu0 0
    %1830 = vmatpush1.bf16.msra.mxu0 0
    %1831 = vmatprep.mubr.bf16.mxu0 0
    %1832 = vmatmul.mubr.bf16.gmra.mrb[0].mxu0 %v215
    %v1833 = vpop.f32.mrb[0].mxu0
    %v1834 = vadd.f32 0.0, %v1833
    %v1835 = vpop.f32.mrb[0].mxu0
    %v1836 = vpop.f32.mrb[0].mxu0
    %v1837 = vadd.f32 0.0, %v1836
    %v1838 = vpop.f32.mrb[0].mxu0
    %1839 = vmatprep.mubr.bf16.mxu0 0
    %1840 = vmatmul.mubr.bf16.gmra.mrb[0].mxu0 %v218
    %v1841 = vpop.f32.mrb[0].mxu0
    %v1842 = vadd.f32 0.0, %v1841
    %v1843 = vpop.f32.mrb[0].mxu0
    %v1844 = vpop.f32.mrb[0].mxu0
    %v1845 = vadd.f32 0.0, %v1844
    %v1846 = vpop.f32.mrb[0].mxu0
    %1847 = vdwg.mxu0
    %v1848 = vpack.c.bf16 %v1709, %v1706
    %v1849 = vpack.c.bf16 %v1717, %v1714
    %1850 = vmatprep.subr.bf16.mxu0 %v534
    %1851 = vmatpush1.bf16.msra.mxu0 %v533
    %1852 = vmatprep.subr.bf16.mxu0 %v537
    %1853 = vmatpush1.bf16.msra.mxu0 %v536
    %1854 = vmatprep.subr.bf16.mxu0 %v540
    %1855 = vmatpush1.bf16.msra.mxu0 %v539
    %1856 = vmatprep.subr.bf16.mxu0 %v543
    %1857 = vmatpush1.bf16.msra.mxu0 %v542
    %1858 = vmatprep.subr.bf16.mxu0 %v546
    %1859 = vmatpush1.bf16.msra.mxu0 %v545
    %1860 = vmatprep.subr.bf16.mxu0 %v549
    %1861 = vmatpush1.bf16.msra.mxu0 %v548
    %1862 = vmatprep.subr.bf16.mxu0 %v552
    %1863 = vmatpush1.bf16.msra.mxu0 %v551
    %1864 = vmatprep.subr.bf16.mxu0 %v555
    %1865 = vmatpush1.bf16.msra.mxu0 %v554
    %1866 = vmatprep.subr.bf16.mxu0 0
    %1867 = vmatpush1.bf16.msra.mxu0 0
    %1868 = vmatprep.subr.bf16.mxu0 0
    %1869 = vmatpush1.bf16.msra.mxu0 0
    %1870 = vmatprep.subr.bf16.mxu0 0
    %1871 = vmatpush1.bf16.msra.mxu0 0
    %1872 = vmatprep.subr.bf16.mxu0 0
    %1873 = vmatpush1.bf16.msra.mxu0 0
    %1874 = vmatprep.subr.bf16.mxu0 0
    %1875 = vmatpush1.bf16.msra.mxu0 0
    %1876 = vmatprep.subr.bf16.mxu0 0
    %1877 = vmatpush1.bf16.msra.mxu0 0
    %1878 = vmatprep.subr.bf16.mxu0 0
    %1879 = vmatpush1.bf16.msra.mxu0 0
    %1880 = vmatprep.subr.bf16.mxu0 0
    %1881 = vmatpush1.bf16.msra.mxu0 0
    %1882 = vmatprep.mubr.bf16.mxu0 0
    %1883 = vmatmul.mubr.bf16.gmra.mrb[0].mxu0 %v1848
    %v1884 = vpop.f32.mrb[0].mxu0
    %v1885 = vadd.f32 0.0, %v1884
    %v1886 = vpop.f32.mrb[0].mxu0
    %v1887 = vadd.f32 0.0, %v1886
    %v1888 = vpop.f32.mrb[0].mxu0
    %v1889 = vadd.f32 0.0, %v1888
    %v1890 = vpop.f32.mrb[0].mxu0
    %v1891 = vadd.f32 0.0, %v1890
    %1892 = vmatprep.mubr.bf16.mxu0 0
    %1893 = vmatmul.mubr.bf16.gmra.mrb[0].mxu0 %v1849
    %v1894 = vpop.f32.mrb[0].mxu0
    %v1895 = vadd.f32 0.0, %v1894
    %v1896 = vpop.f32.mrb[0].mxu0
    %v1897 = vadd.f32 0.0, %v1896
    %v1898 = vpop.f32.mrb[0].mxu0
    %v1899 = vadd.f32 0.0, %v1898
    %v1900 = vpop.f32.mrb[0].mxu0
    %v1901 = vadd.f32 0.0, %v1900
    %1902 = vdwg.mxu0
    %1903 = vmatprep.subr.bf16.mxu0 0
    %1904 = vmatpush1.bf16.msra.mxu0 %v535
    %1905 = vmatprep.subr.bf16.mxu0 0
    %1906 = vmatpush1.bf16.msra.mxu0 %v538
    %1907 = vmatprep.subr.bf16.mxu0 0
    %1908 = vmatpush1.bf16.msra.mxu0 %v541
    %1909 = vmatprep.subr.bf16.mxu0 0
    %1910 = vmatpush1.bf16.msra.mxu0 %v544
    %1911 = vmatprep.subr.bf16.mxu0 0
    %1912 = vmatpush1.bf16.msra.mxu0 %v547
    %1913 = vmatprep.subr.bf16.mxu0 0
    %1914 = vmatpush1.bf16.msra.mxu0 %v550
    %1915 = vmatprep.subr.bf16.mxu0 0
    %1916 = vmatpush1.bf16.msra.mxu0 %v553
    %1917 = vmatprep.subr.bf16.mxu0 0
    %1918 = vmatpush1.bf16.msra.mxu0 %v556
    %1919 = vmatprep.subr.bf16.mxu0 0
    %1920 = vmatpush1.bf16.msra.mxu0 0
    %1921 = vmatprep.subr.bf16.mxu0 0
    %1922 = vmatpush1.bf16.msra.mxu0 0
    %1923 = vmatprep.subr.bf16.mxu0 0
    %1924 = vmatpush1.bf16.msra.mxu0 0
    %1925 = vmatprep.subr.bf16.mxu0 0
    %1926 = vmatpush1.bf16.msra.mxu0 0
    %1927 = vmatprep.subr.bf16.mxu0 0
    %1928 = vmatpush1.bf16.msra.mxu0 0
    %1929 = vmatprep.subr.bf16.mxu0 0
    %1930 = vmatpush1.bf16.msra.mxu0 0
    %1931 = vmatprep.subr.bf16.mxu0 0
    %1932 = vmatpush1.bf16.msra.mxu0 0
    %1933 = vmatprep.subr.bf16.mxu0 0
    %1934 = vmatpush1.bf16.msra.mxu0 0
    %1935 = vmatprep.mubr.bf16.mxu0 0
    %1936 = vmatmul.mubr.bf16.gmra.mrb[0].mxu0 %v1848
    %v1937 = vpop.f32.mrb[0].mxu0
    %v1938 = vadd.f32 0.0, %v1937
    %v1939 = vpop.f32.mrb[0].mxu0
    %v1940 = vpop.f32.mrb[0].mxu0
    %v1941 = vadd.f32 0.0, %v1940
    %v1942 = vpop.f32.mrb[0].mxu0
    %1943 = vmatprep.mubr.bf16.mxu0 0
    %1944 = vmatmul.mubr.bf16.gmra.mrb[0].mxu0 %v1849
    %v1945 = vpop.f32.mrb[0].mxu0
    %v1946 = vadd.f32 0.0, %v1945
    %v1947 = vpop.f32.mrb[0].mxu0
    %v1948 = vpop.f32.mrb[0].mxu0
    %v1949 = vadd.f32 0.0, %v1948
    %v1950 = vpop.f32.mrb[0].mxu0
    %1951 = vdwg.mxu0
    %v1952 = vsel %vm699, %v1885, %v169
    %v1953 = vsel %vm699, %v1887, %v170
    %v1954 = vsel %vm699, %v1938, %v171
    %v1955 = vsel %vm700, %v1889, %v172
    %v1956 = vsel %vm700, %v1891, %v173
    %v1957 = vsel %vm700, %v1941, %v174
    %v1958 = vsel %vm701, %v1895, %v175
    %v1959 = vsel %vm701, %v1897, %v176
    %v1960 = vsel %vm701, %v1946, %v177
    %v1961 = vsel %vm702, %v1899, %v178
    %v1962 = vsel %vm702, %v1901, %v179
    %v1963 = vsel %vm702, %v1949, %v180
    %v1964 = vadd.f32 %v1952, %v719
    %v1965 = vadd.f32 %v1953, %v723
    %v1966 = vadd.f32 %v1954, %v727
    %v1967 = vadd.f32 %v1955, %v719
    %v1968 = vadd.f32 %v1956, %v723
    %v1969 = vadd.f32 %v1957, %v727
    %v1970 = vadd.f32 %v1958, %v719
    %v1971 = vadd.f32 %v1959, %v723
    %v1972 = vadd.f32 %v1960, %v727
    %v1973 = vadd.f32 %v1961, %v719
    %v1974 = vadd.f32 %v1962, %v723
    %v1975 = vadd.f32 %v1963, %v727
    %v1976 = vxor.u32 %v1964, 2147483648
    %v1977 = vxor.u32 %v1967, 2147483648
    %v1978 = vxor.u32 %v1970, 2147483648
    %v1979 = vxor.u32 %v1973, 2147483648
    %v1980 = vmul.f32 %v1976, 1.442695
    %v1981 = vpow.pop %v1980
    %v1982 = vmul.f32 %v1977, 1.442695
    %v1983 = vpow.pop %v1982
    %v1984 = vmul.f32 %v1978, 1.442695
    %v1985 = vpow.pop %v1984
    %v1986 = vmul.f32 %v1979, 1.442695
    %v1987 = vpow.pop %v1986
    %v1988 = vadd.f32 %v1981, 1.0
    %v1989 = vadd.f32 %v1983, 1.0
    %v1990 = vadd.f32 %v1985, 1.0
    %v1991 = vadd.f32 %v1987, 1.0
    %v1992 = vrcp.pop %v1988
    %v1993 = vmul.f32 1.0, %v1992
    %v1994 = vrcp.pop %v1989
    %v1995 = vmul.f32 1.0, %v1994
    %v1996 = vrcp.pop %v1990
    %v1997 = vmul.f32 1.0, %v1996
    %v1998 = vrcp.pop %v1991
    %v1999 = vmul.f32 1.0, %v1998
    %v2000 = vxor.u32 %v1965, 2147483648
    %v2001 = vxor.u32 %v1968, 2147483648
    %v2002 = vxor.u32 %v1971, 2147483648
    %v2003 = vxor.u32 %v1974, 2147483648
    %v2004 = vmul.f32 %v2000, 1.442695
    %v2005 = vpow.pop %v2004
    %v2006 = vmul.f32 %v2001, 1.442695
    %v2007 = vpow.pop %v2006
    %v2008 = vmul.f32 %v2002, 1.442695
    %v2009 = vpow.pop %v2008
    %v2010 = vmul.f32 %v2003, 1.442695
    %v2011 = vpow.pop %v2010
    %v2012 = vadd.f32 %v2005, 1.0
    %v2013 = vadd.f32 %v2007, 1.0
    %v2014 = vadd.f32 %v2009, 1.0
    %v2015 = vadd.f32 %v2011, 1.0
    %v2016 = vrcp.pop %v2012
    %v2017 = vmul.f32 1.0, %v2016
    %v2018 = vrcp.pop %v2013
    %v2019 = vmul.f32 1.0, %v2018
    %v2020 = vrcp.pop %v2014
    %v2021 = vmul.f32 1.0, %v2020
    %v2022 = vrcp.pop %v2015
    %v2023 = vmul.f32 1.0, %v2022
    %v2024 = vtanh.pop %v1966
    %v2025 = vtanh.pop %v1969
    %v2026 = vtanh.pop %v1972
    %v2027 = vtanh.pop %v1975
    %v2028 = vsel %vm699, %v1834, %v1665
    %v2029 = vsel %vm700, %v1837, %v1666
    %v2030 = vsel %vm701, %v1842, %v1667
    %v2031 = vsel %vm702, %v1845, %v1668
    %v2032 = vmul.f32 %v1993, %v2024
    %v2033 = vmul.f32 %v1995, %v2025
    %v2034 = vmul.f32 %v1997, %v2026
    %v2035 = vmul.f32 %v1999, %v2027
    %v2036 = vadd.f32 %v2032, %v2028
    %v2037 = vadd.f32 %v2033, %v2029
    %v2038 = vadd.f32 %v2034, %v2030
    %v2039 = vadd.f32 %v2035, %v2031
    %v2040 = vtanh.pop %v2036
    %v2041 = vtanh.pop %v2037
    %v2042 = vtanh.pop %v2038
    %v2043 = vtanh.pop %v2039
    %v2044 = vmul.f32 %v2017, %v2040
    %v2045 = vmul.f32 %v2019, %v2041
    %v2046 = vmul.f32 %v2021, %v2042
    %v2047 = vmul.f32 %v2023, %v2043
    %vm2048 = vcmp.eq.s32.totalorder %v181, 3
    %vm2049 = vcmp.eq.s32.totalorder %v182, 3
    %vm2050 = vcmp.eq.s32.totalorder %v183, 3
    %vm2051 = vcmp.eq.s32.totalorder %v184, 3
    %v2052 = vsel %vm2048, 1, 0
    %v2053 = vsel %vm2049, 1, 0
    %v2054 = vsel %vm2050, 1, 0
    %v2055 = vsel %vm2051, 1, 0
    %2056 = vset.pattern.permute.xlu0 0
    %2057 = vperm.xlu0 %2056, %v2052
    %v2058 = vpop.permute.xlu0 %2057
    %2059 = vset.pattern.permute.xlu0 0
    %2060 = vperm.xlu0 %2059, %v2053
    %v2061 = vpop.permute.xlu0 %2060
    %2062 = vset.pattern.permute.xlu0 0
    %2063 = vperm.xlu0 %2062, %v2054
    %v2064 = vpop.permute.xlu0 %2063
    %2065 = vset.pattern.permute.xlu0 0
    %2066 = vperm.xlu0 %2065, %v2055
    %v2067 = vpop.permute.xlu0 %2066
    %vm2068 = vcmp.eq.s32.totalorder %v2058, 1
    %vm2069 = vcmp.eq.s32.totalorder %v2061, 1
    %vm2070 = vcmp.eq.s32.totalorder %v2064, 1
    %vm2071 = vcmp.eq.s32.totalorder %v2067, 1
    %v2072 = vsel %vm2068, %v2044, %v1661
    %v2073 = vsel %vm2069, %v2045, %v1662
    %v2074 = vsel %vm2070, %v2046, %v1663
    %v2075 = vsel %vm2071, %v2047, %v1664
    %2076 = vst [vmem:[#allocation13] sm:$0xff] %v2072
    %2077 = vst [vmem:[#allocation13 + $0x8] sm:$0xff] %v2073
    %2078 = vst [vmem:[#allocation13 + $0x10] sm:$0xff] %v2074
    %2079 = vst [vmem:[#allocation13 + $0x18] sm:$0xff] %v2075
    // Predicated region
    $region66: #{tpu_custom_call.1} parent=1 // pred_check
      _
    $region67: #{tpu_custom_call.1} parent=1 // pred_check_branch
      %2081 = sbr.rel (0) target = $region69
    $region68: #{tpu_custom_call.1} parent=1 // pred_region
      %s2083 = ssub.s32 512, 512
      %2084 = vsyncadd [#allocation4], %s2083
      %s2085 = sshll.u32 [#allocation13], 4
      %s2086 = int_to_ptr.vmem [resolvable:$true] %s2085
      %2091 = dma.vmem_to_hbm [thread:$0]  %s2086, 512, %s10, [#allocation4], 128, 128, 8
    $region69: #{tpu_custom_call.1} parent=1 // pred_fallthru
      _
    // Predicated region
    $region70: #{tpu_custom_call.1} parent=1 // pred_check
      _
    $region71: #{tpu_custom_call.1} parent=1 // pred_check_branch
      %2093 = sbr.rel (0) target = $region73
    $region72: #{tpu_custom_call.1} parent=1 // pred_region
      %2094 = dma.done [#allocation4], 512
    $region73: #{tpu_custom_call.1} parent=1 // pred_fallthru
      _
    %2095 = vsyncpa [#allocation3], 1
    %2096 = vsyncpa [#allocation6], 1
    %2097 = vsyncpa [#allocation9], 1
    %2098 = vsyncpa [#allocation12], 1
    %2099 = vsyncpa [#allocation4], 1

</llo_original>
